<compile_context>
chip_gen: v6e
topology: v6e:2x2x1
jax: 0.10.0
libtpu: 0.0.40
codegen_flags: <defaults>
</compile_context>

<pallas_src>
import numpy as np
import jax
import jax.numpy as jnp
from jax import lax
from jax.experimental import pallas as pl
from jax.experimental.pallas import tpu as pltpu

DP = 8  # packed sublane layout: [c0, c1, c2, |p|^2, 1, 0, 0, 0]


def _round_up(a, m):
    return -(-a // m) * m


def _make_drmsd_kernel(Bt, T):
    """Grid (batch_block, tile_pair).  Each step computes the (Bt, T, T) slab of
    squared distance-matrix differences for tile pair (tr, tc), tc >= tr, and
    writes its per-column sums (doubled for strictly-upper tiles).

    xu/yu : (Bt, DP, T) u-form of row tile tr
            sublanes = [x0, x1, x2, |x|^2, 1, 0, 0, 0] * valid
    xw/yw : (Bt, DP, T) w-form of col tile tc
            sublanes = [-2x0, -2x1, -2x2, 1, |x|^2, 0, 0, 0] * valid
    u_i . w_j == |x_i|^2 + |x_j|^2 - 2 x_i.x_j == squared pairwise distance;
    invalid / padded rows are all-zero u/w vectors, so they contribute 0.
    """
    dn = (((1,), (1,)), ((0,), (0,)))  # contract packed sublane axis; batch Bt

    def kernel(tr_ref, tc_ref, xu_ref, xw_ref, yu_ref, yw_ref, out_ref):
        p = pl.program_id(1)
        tr = tr_ref[p]
        tc = tc_ref[p]

        # K = 8 MXU contraction on the transposed-LHS path (no vxpose of the
        # (8, T) row tile).  HIGHEST keeps the cancellation-prone expansion
        # |x_i|^2 + |x_j|^2 - 2 x_i.x_j f32-accurate and costs ~nothing at K=8.
        dx = lax.dot_general(xu_ref[...], xw_ref[...], dn,
                             precision=lax.Precision.HIGHEST,
                             preferred_element_type=jnp.float32)   # (Bt, T, T)
        dy = lax.dot_general(yu_ref[...], yw_ref[...], dn,
                             precision=lax.Precision.HIGHEST,
                             preferred_element_type=jnp.float32)

        rdx = jnp.maximum(dx, 0.0)        # relu, as in the reference pair_dist
        rdy = jnp.maximum(dy, 0.0)
        # (sqrt(rdy) - sqrt(rdx))^2 == rdx + rdy - 2*sqrt(rdx*rdy): one EUP sqrt
        # per pair element instead of two.
        d2 = jnp.maximum(rdx + rdy - 2.0 * jnp.sqrt(rdx * rdy), 0.0)

        # Zero the diagonal (only reachable on diagonal tiles tr == tc).
        io_r = lax.broadcasted_iota(jnp.int32, (Bt, T, T), 1)
        io_c = lax.broadcasted_iota(jnp.int32, (Bt, T, T), 2)
        keep = jnp.logical_or(io_r != io_c, tr != tc)
        d2 = jnp.where(keep, d2, 0.0)

        # Per-column partial sums (sublane reduction); strictly-upper tiles
        # stand in for their mirrored lower-triangle twin as well (x2).
        colsum = jnp.sum(d2, axis=1)                               # (Bt, T)
        scale = jnp.where(tc > tr, 2.0, 1.0)
        out_ref[0, 0] = colsum * scale     # one dense (Bt, T) store per step

    return kernel


def _choose_tiling(L, B, t_max=None):
    """Pick (Npp, T, nt, Bt, Bp, vmem_limit).  Square T x T tiles keep the
    (Bt, T, T) f32 temporaries bounded on every TPU generation."""
    try:
        vmem_cap = int(pltpu.get_tpu_info().vmem_capacity_bytes)
    except Exception:
        vmem_cap = 64 << 20             # conservative (v7x-class VMEM per core)
    if t_max is None:
        t_max = 1024 if vmem_cap >= (100 << 20) else 512    # v5e/v6e vs v7x

    if L <= 128:
        Npp = max(8, _round_up(L, 8))
    else:
        Npp = _round_up(L, 128)

    if Npp <= t_max:
        T, nt = Npp, 1
    else:
        # Minimal tile count first, then shrink T to limit column padding
        # (avoids e.g. 641 -> 1024-wide waste); T stays a multiple of 128.
        nt = -(-Npp // t_max)
        T = _round_up(-(-Npp // nt), 128)
        Npp = nt * T

    # Batch several small problems per grid step to amortize the ~0.35 us
    # per-step overhead; keep Bt = 1 once per-batch slabs are already large.
    if nt == 1:
        Bt = max(1, min(B, (512 * 512) // max(T * T, 1), 32))
    else:
        Bt = 1
    Bp = _round_up(B, Bt)

    # Raise the scoped-VMEM limit only when the live f32 slabs need it.
    slab = Bt * T * T * 4
    if 6 * slab > (12 << 20):
        vmem_limit = int(min(vmem_cap * 3 // 4, max(10 * slab, 32 << 20)))
    else:
        vmem_limit = None
    return Npp, T, nt, Bt, Bp, vmem_limit


def drmsd_pallas(x, y, mask, *, _t_max=None):
    """x, y: (L, B, 3); mask: (L, B), nonzero values are row indices (a value
    of 0 means 'not selected' — same semantics as the PyTorch module)."""
    L, B, D = x.shape
    assert D == 3, "dRMSD expects 3-D coordinates"

    xp = jnp.transpose(x, (1, 0, 2)).astype(jnp.float32)       # (B, L, 3)
    yp = jnp.transpose(y, (1, 0, 2)).astype(jnp.float32)
    mp = jnp.transpose(mask, (1, 0))                            # (B, L)

    idx = mp.astype(jnp.int32)                                  # mask values = row indices
    valid = (mp != 0).astype(jnp.float32)                       # (B, L)

    # Gather the selected rows (order is irrelevant for the pairwise norms);
    # unselected rows are zeroed via the validity flag below.
    xg = jnp.take_along_axis(xp, idx[..., None], axis=1)        # (B, L, 3)
    yg = jnp.take_along_axis(yp, idx[..., None], axis=1)

    xn = jnp.sum(xg * xg, axis=-1)                              # (B, L)
    yn = jnp.sum(yg * yg, axis=-1)
    ones = jnp.ones_like(xn)
    zeros = jnp.zeros_like(xn)

    def u_form(g, n):    # (B, DP, L): coordinate-major, lane axis = L (dense)
        return jnp.stack([g[..., 0], g[..., 1], g[..., 2], n, ones,
                          zeros, zeros, zeros], axis=1)

    def w_form(g, n):
        return jnp.stack([-2.0 * g[..., 0], -2.0 * g[..., 1], -2.0 * g[..., 2],
                          ones, n, zeros, zeros, zeros], axis=1)

    vm = valid[:, None, :]                                      # zero invalid rows
    xu = u_form(xg, xn) * vm
    xw = w_form(xg, xn) * vm
    yu = u_form(yg, yn) * vm
    yw = w_form(yg, yn) * vm

    Npp, T, nt, Bt, Bp, vmem_limit = _choose_tiling(L, B, _t_max)
    nb = Bp // Bt
    pad = ((0, Bp - B), (0, 0), (0, Npp - L))                   # zero rows are inert
    xu, xw, yu, yw = (jnp.pad(a, pad) for a in (xu, xw, yu, yw))

    # Upper-triangle tile pairs (tc >= tr), scalar-prefetched so the BlockSpec
    # index maps can walk them data-dependently.
    pairs = [(r, c) for r in range(nt) for c in range(r, nt)]
    n_pairs = len(pairs)
    tr_arr = jnp.array([r for r, _ in pairs], dtype=jnp.int32)
    tc_arr = jnp.array([c for _, c in pairs], dtype=jnp.int32)

    row_spec = pl.BlockSpec((Bt, DP, T), lambda b, p, tr, tc: (b, 0, tr[p]))
    col_spec = pl.BlockSpec((Bt, DP, T), lambda b, p, tr, tc: (b, 0, tc[p]))
    out_spec = pl.BlockSpec((1, 1, Bt, T), lambda b, p, tr, tc: (b, p, 0, 0))

    cp = dict(dimension_semantics=("parallel", "parallel"))
    if vmem_limit is not None:
        cp["vmem_limit_bytes"] = vmem_limit

    colsums = pl.pallas_call(
        _make_drmsd_kernel(Bt, T),
        out_shape=jax.ShapeDtypeStruct((nb, n_pairs, Bt, T), jnp.float32),
        grid_spec=pltpu.PrefetchScalarGridSpec(
            num_scalar_prefetch=2,
            grid=(nb, n_pairs),
            in_specs=[row_spec, col_spec, row_spec, col_spec],
            out_specs=out_spec,
        ),
        compiler_params=pltpu.CompilerParams(**cp),
    )(tr_arr, tc_arr, xu, xw, yu, yw)

    # Finalize per batch in plain JAX (trivial O(B * nt * T) work).
    ss = jnp.sum(colsums, axis=(1, 3)).reshape(Bp)[:B]          # ||D||_F^2 per batch
    cnt = jnp.sum(valid, axis=1)                                # #selected rows
    # NOTE: cnt < 2 gives 0/0 = NaN, exactly like the PyTorch reference.
    per_batch = jnp.sqrt(ss) / jnp.sqrt(cnt * cnt - cnt)
    return jnp.mean(per_batch).reshape(1)


def drmsd_reference(x, y, mask):
    """Pure numpy re-implementation of the PyTorch module for verification."""
    x = np.transpose(np.asarray(x, dtype=np.float64), (1, 0, 2))
    y = np.transpose(np.asarray(y, dtype=np.float64), (1, 0, 2))
    m = np.transpose(np.asarray(mask), (1, 0))
    B = x.shape[0]

    def pd(a):
        an = (a ** 2).sum(1)[:, None]
        d = an + an.T - 2.0 * a @ a.T
        np.fill_diagonal(d, 0.0)
        d = np.maximum(d, 0.0)
        return np.sqrt(d)

    total = 0.0
    for i in range(B):
        idx = m[i][m[i] != 0].astype(np.int64)
        Dm = pd(y[i][idx]) - pd(x[i][idx])
        n = idx.shape[0]
        total += np.linalg.norm(Dm) / np.sqrt(n * n - n)
    return np.array([total / B], dtype=np.float32)


if __name__ == "__main__":
    D = 3

    # --- Test 1: tiny single-tile problem ------------------------------------
    L, B = 8, 2
    kx, ky = jax.random.split(jax.random.PRNGKey(0))
    x = jax.random.normal(kx, (L, B, D), jnp.float32)
    y = jax.random.normal(ky, (L, B, D), jnp.float32)
    # mask values are row indices into [0, L); 0 means "not selected"
    mask = jnp.array(
        [[1, 2],
         [3, 5],
         [4, 0],
         [6, 7],
         [0, 1],
         [2, 3],
         [7, 0],
         [5, 6]], dtype=jnp.float32)             # (L, B)

    out = jax.block_until_ready(drmsd_pallas(x, y, mask))
    ref = drmsd_reference(np.asarray(x), np.asarray(y), np.asarray(mask))
    np.testing.assert_allclose(np.asarray(out), ref, rtol=1e-4, atol=1e-5)

    # --- Test 2: force the multi-tile upper-triangle path (2x2 tiles of 128) --
    L2, B2 = 200, 2
    k1, k2, k3 = jax.random.split(jax.random.PRNGKey(0), 3)
    x2 = jax.random.normal(k1, (L2, B2, D), jnp.float32)
    y2 = jax.random.normal(k2, (L2, B2, D), jnp.float32)
    sel = jax.random.uniform(k3, (L2, B2)) > 0.15
    mask2 = jnp.where(sel, jnp.arange(L2, dtype=jnp.float32)[:, None], 0.0)

    out2 = jax.block_until_ready(drmsd_pallas(x2, y2, mask2, _t_max=128))
    ref2 = drmsd_reference(np.asarray(x2), np.asarray(y2), np.asarray(mask2))
    np.testing.assert_allclose(np.asarray(out2), ref2, rtol=5e-4, atol=1e-5)

    print("KERNEL_OK")
</pallas_src>

<mosaic_0001>
module attributes {stable_mosaic.version = 11 : i64} {
  func.func @kernel(%arg0: i32, %arg1: i32, %arg2: memref<1xi32, #tpu.memory_space<smem>>, %arg3: memref<1xi32, #tpu.memory_space<smem>>, %arg4: memref<2x8x8xf32, #tpu.memory_space<vmem>>, %arg5: memref<2x8x8xf32, #tpu.memory_space<vmem>>, %arg6: memref<2x8x8xf32, #tpu.memory_space<vmem>>, %arg7: memref<2x8x8xf32, #tpu.memory_space<vmem>>, %arg8: memref<1x1x2x8xf32, #tpu.memory_space<vmem>>) attributes {dimension_semantics = [#tpu.dimension_semantics<parallel>, #tpu.dimension_semantics<parallel>], iteration_bounds = array<i64: 1, 1>, scalar_prefetch = 2 : i64, scratch_operands = 0 : i64, tpu.core_type = #tpu.core_type<tc>, window_params = [{transform_indices = @transform_0, window_bounds = array<i64: 2, 8, 8>}, {transform_indices = @transform_1, window_bounds = array<i64: 2, 8, 8>}, {transform_indices = @transform_2, window_bounds = array<i64: 2, 8, 8>}, {transform_indices = @transform_3, window_bounds = array<i64: 2, 8, 8>}, {transform_indices = @transform_4, window_bounds = array<i64: 1, 1, 2, 8>}]} {
    %0 = arith.index_cast %arg1 : i32 to index
    %1 = memref.load %arg2[%0] : memref<1xi32, #tpu.memory_space<smem>>
    %2 = arith.index_cast %arg1 : i32 to index
    %3 = memref.load %arg3[%2] : memref<1xi32, #tpu.memory_space<smem>>
    %c0 = arith.constant 0 : index
    %c0_0 = arith.constant 0 : index
    %c0_1 = arith.constant 0 : index
    %4 = vector.load %arg4[%c0, %c0_0, %c0_1] : memref<2x8x8xf32, #tpu.memory_space<vmem>>, vector<2x8x8xf32>
    %c0_2 = arith.constant 0 : index
    %c0_3 = arith.constant 0 : index
    %c0_4 = arith.constant 0 : index
    %5 = vector.load %arg5[%c0_2, %c0_3, %c0_4] : memref<2x8x8xf32, #tpu.memory_space<vmem>>, vector<2x8x8xf32>
    %cst = arith.constant dense<0.000000e+00> : vector<2x8x8xf32>
    %6 = tpu.matmul %4, %5, %cst {dimension_numbers = #tpu.dot_dimension_numbers<[1], [1], [2], [2], [0, 0, 0, 2, 1, 2], [0], [0]>, precision = #tpu.contract_precision<fp32>} : vector<2x8x8xf32>, vector<2x8x8xf32>, vector<2x8x8xf32> -> vector<2x8x8xf32>
    %c0_5 = arith.constant 0 : index
    %c0_6 = arith.constant 0 : index
    %c0_7 = arith.constant 0 : index
    %7 = vector.load %arg6[%c0_5, %c0_6, %c0_7] : memref<2x8x8xf32, #tpu.memory_space<vmem>>, vector<2x8x8xf32>
    %c0_8 = arith.constant 0 : index
    %c0_9 = arith.constant 0 : index
    %c0_10 = arith.constant 0 : index
    %8 = vector.load %arg7[%c0_8, %c0_9, %c0_10] : memref<2x8x8xf32, #tpu.memory_space<vmem>>, vector<2x8x8xf32>
    %cst_11 = arith.constant dense<0.000000e+00> : vector<2x8x8xf32>
    %9 = tpu.matmul %7, %8, %cst_11 {dimension_numbers = #tpu.dot_dimension_numbers<[1], [1], [2], [2], [0, 0, 0, 2, 1, 2], [0], [0]>, precision = #tpu.contract_precision<fp32>} : vector<2x8x8xf32>, vector<2x8x8xf32>, vector<2x8x8xf32> -> vector<2x8x8xf32>
    %cst_12 = arith.constant 0.000000e+00 : f32
    %10 = vector.broadcast %cst_12 : f32 to vector<2x8x8xf32>
    %11 = arith.maximumf %6, %10 : vector<2x8x8xf32>
    %cst_13 = arith.constant 0.000000e+00 : f32
    %12 = vector.broadcast %cst_13 : f32 to vector<2x8x8xf32>
    %13 = arith.maximumf %9, %12 : vector<2x8x8xf32>
    %14 = arith.addf %11, %13 : vector<2x8x8xf32>
    %15 = arith.mulf %11, %13 : vector<2x8x8xf32>
    %16 = math.sqrt %15 : vector<2x8x8xf32>
    %cst_14 = arith.constant 2.000000e+00 : f32
    %17 = vector.broadcast %cst_14 : f32 to vector<2x8x8xf32>
    %18 = arith.mulf %17, %16 : vector<2x8x8xf32>
    %19 = arith.subf %14, %18 : vector<2x8x8xf32>
    %cst_15 = arith.constant 0.000000e+00 : f32
    %20 = vector.broadcast %cst_15 : f32 to vector<2x8x8xf32>
    %21 = arith.maximumf %19, %20 : vector<2x8x8xf32>
    %22 = tpu.iota {dimensions = array<i32: 1>} : vector<2x8x8xi32>
    %23 = tpu.iota {dimensions = array<i32: 2>} : vector<2x8x8xi32>
    %24 = arith.cmpi ne, %22, %23 : vector<2x8x8xi32>
    %25 = arith.cmpi ne, %1, %3 : i32
    %26 = vector.broadcast %25 : i1 to vector<2x8x8xi1>
    %27 = arith.ori %24, %26 : vector<2x8x8xi1>
    %cst_16 = arith.constant 0.000000e+00 : f32
    %28 = vector.broadcast %cst_16 : f32 to vector<2x8x8xf32>
    %29 = arith.select %27, %21, %28 : vector<2x8x8xi1>, vector<2x8x8xf32>
    %cst_17 = arith.constant dense<0.000000e+00> : vector<2x8xf32>
    %30 = vector.multi_reduction <add>, %29, %cst_17 [1] : vector<2x8x8xf32> to vector<2x8xf32>
    %31 = arith.cmpi sgt, %3, %1 : i32
    %cst_18 = arith.constant 2.000000e+00 : f32
    %cst_19 = arith.constant 1.000000e+00 : f32
    %32 = arith.select %31, %cst_18, %cst_19 : f32
    %33 = vector.broadcast %32 : f32 to vector<2x8xf32>
    %34 = arith.mulf %30, %33 : vector<2x8xf32>
    %c0_20 = arith.constant 0 : index
    %c0_21 = arith.constant 0 : index
    %c0_22 = arith.constant 0 : index
    %c0_23 = arith.constant 0 : index
    %35 = vector.load %arg8[%c0_20, %c0_21, %c0_22, %c0_23] : memref<1x1x2x8xf32, #tpu.memory_space<vmem>>, vector<1x1x2x8xf32>
    %36 = vector.shape_cast %35 : vector<1x1x2x8xf32> to vector<2x8xf32>
    %37 = vector.shape_cast %34 : vector<2x8xf32> to vector<1x1x2x8xf32>
    tpu.vector_store %arg8[%c0_20, %c0_21, %c0_22, %c0_23], %37 {strides = array<i32>} : memref<1x1x2x8xf32, #tpu.memory_space<vmem>>, vector<1x1x2x8xf32>,
    return
  }
  func.func @transform_0(%arg0: i32, %arg1: i32, %arg2: memref<1xi32, #tpu.memory_space<smem>>, %arg3: memref<1xi32, #tpu.memory_space<smem>>) -> (i32, i32, i32) {
    %0 = arith.index_cast %arg1 : i32 to index
    %1 = memref.load %arg2[%0] : memref<1xi32, #tpu.memory_space<smem>>
    %c0_i32 = arith.constant 0 : i32
    %c0_i32_0 = arith.constant 0 : i32
    return %arg0, %c0_i32, %1 : i32, i32, i32
  }
  func.func @transform_1(%arg0: i32, %arg1: i32, %arg2: memref<1xi32, #tpu.memory_space<smem>>, %arg3: memref<1xi32, #tpu.memory_space<smem>>) -> (i32, i32, i32) {
    %0 = arith.index_cast %arg1 : i32 to index
    %1 = memref.load %arg3[%0] : memref<1xi32, #tpu.memory_space<smem>>
    %c0_i32 = arith.constant 0 : i32
    %c0_i32_0 = arith.constant 0 : i32
    return %arg0, %c0_i32, %1 : i32, i32, i32
  }
  func.func @transform_2(%arg0: i32, %arg1: i32, %arg2: memref<1xi32, #tpu.memory_space<smem>>, %arg3: memref<1xi32, #tpu.memory_space<smem>>) -> (i32, i32, i32) {
    %0 = arith.index_cast %arg1 : i32 to index
    %1 = memref.load %arg2[%0] : memref<1xi32, #tpu.memory_space<smem>>
    %c0_i32 = arith.constant 0 : i32
    %c0_i32_0 = arith.constant 0 : i32
    return %arg0, %c0_i32, %1 : i32, i32, i32
  }
  func.func @transform_3(%arg0: i32, %arg1: i32, %arg2: memref<1xi32, #tpu.memory_space<smem>>, %arg3: memref<1xi32, #tpu.memory_space<smem>>) -> (i32, i32, i32) {
    %0 = arith.index_cast %arg1 : i32 to index
    %1 = memref.load %arg3[%0] : memref<1xi32, #tpu.memory_space<smem>>
    %c0_i32 = arith.constant 0 : i32
    %c0_i32_0 = arith.constant 0 : i32
    return %arg0, %c0_i32, %1 : i32, i32, i32
  }
  func.func @transform_4(%arg0: i32, %arg1: i32, %arg2: memref<1xi32, #tpu.memory_space<smem>>, %arg3: memref<1xi32, #tpu.memory_space<smem>>) -> (i32, i32, i32, i32) {
    %c0_i32 = arith.constant 0 : i32
    %c0_i32_0 = arith.constant 0 : i32
    %c0_i32_1 = arith.constant 0 : i32
    return %arg0, %arg1, %c0_i32, %c0_i32_0 : i32, i32, i32, i32
  }
}

</mosaic_0001>

<llo_original>
// kernel: tpu_custom_call.1
$region0: #{tpu_custom_call.1}
  #allocation0 [shape = 'u32[]', space=smem, size = 0x4, offset = 0x4, fixed_abs, tag = 'smem constant byte address 0x4 - core index']
  #allocation1 [shape = 'u32[144,128]{1,0:T(1,128)}', space=vmem, size = 0x12000, scoped, tag = 'internal scratch']
  #allocation2 [shape = 's32[1]{0}', space=sflag, size = 0x4, scoped, tag = 'scoped memory for tpu_custom_call.1']
  #allocation3 [shape = 's32[1]{0:T(128)S(6)}', space=smem, size = 0x200, scoped, tag = 'prefetched SMEM operand 0']
  #allocation4 [shape = 's32[1]{0:T(128)S(6)}', space=smem, size = 0x200, scoped, tag = 'prefetched SMEM operand 1']
  %s0 = inlined_call_operand.<no memory space> [shape: s32[1], index: 0, kind: input, shape index: {}]
  %s1 = inlined_call_operand.<no memory space> [shape: s32[1], index: 1, kind: input, shape index: {}]
  %s2 = inlined_call_operand.hbm [shape: f32[2,8,8], index: 2, kind: input, shape index: {}]
  %s3 = inlined_call_operand.hbm [shape: f32[2,8,8], index: 3, kind: input, shape index: {}]
  %s4 = inlined_call_operand.hbm [shape: f32[2,8,8], index: 4, kind: input, shape index: {}]
  %s5 = inlined_call_operand.hbm [shape: f32[2,8,8], index: 5, kind: input, shape index: {}]
  %s6 = inlined_call_operand.hbm [shape: f32[1,1,2,8], index: 6, kind: output, shape index: {}]
  %s7 = sld [smem:[#allocation0]]
  $region42: #{tpu_custom_call.1} parent=0
    _
  %s9 = ssub.s32 1, %s7
  %s10 = scalar_select 0, %s9, %s7
  %11 = sst [smem:[#allocation3]] %s0
  %12 = sst [smem:[#allocation4]] %s1
  $region1: #{tpu_custom_call.1} parent=0
    #allocation5 [shape = 'u8[8192]{0}', space=vmem, size = 0x2000, scoped, tag = 'input window, operand 2, single buffered']
    #allocation6 [shape = 's32[1]{0}', space=sflag, size = 0x4, scoped, tag = 'scoped memory for tpu_custom_call.1']
    #allocation7 [shape = 's32[1]{0}', space=sflag, size = 0x4, scoped, tag = 'scoped memory for tpu_custom_call.1']
    #allocation8 [shape = 'u8[8192]{0}', space=vmem, size = 0x2000, scoped, tag = 'input window, operand 3, single buffered']
    #allocation9 [shape = 's32[1]{0}', space=sflag, size = 0x4, scoped, tag = 'scoped memory for tpu_custom_call.1']
    #allocation10 [shape = 'u8[8192]{0}', space=vmem, size = 0x2000, scoped, tag = 'input window, operand 4, single buffered']
    #allocation11 [shape = 'u8[8192]{0}', space=vmem, size = 0x2000, scoped, tag = 'input window, operand 5, single buffered']
    #allocation12 [shape = 's32[1]{0}', space=sflag, size = 0x4, scoped, tag = 'scoped memory for tpu_custom_call.1']
    #allocation13 [shape = 'u8[1024]{0}', space=vmem, size = 0x400, scoped, tag = 'output window, operand 0, single buffered']
    %13 = vsyncpa [#allocation6], 0
    %14 = vsyncpa [#allocation9], 0
    %15 = vsyncpa [#allocation12], 0
    %16 = vsyncpa [#allocation7], 0
    // Predicated region
    $region2: #{tpu_custom_call.1} parent=1 // pred_check
      _
    $region3: #{tpu_custom_call.1} parent=1 // pred_check_branch
      %18 = sbr.rel (0) target = $region5
    $region4: #{tpu_custom_call.1} parent=1 // pred_region
      %s19 = sld [smem:[#allocation3]]
      %s21 = ssub.s32 256, 256
      %22 = vsyncadd [#allocation6], %s21
      %s23 = smul.addr %s19, 128
      %s24 = scalar_lea.hbm %s2, %s23
      %s25 = sshll.u32 [#allocation5], 4
      %s26 = int_to_ptr.vmem [resolvable:$true] %s25
      %31 = dma.hbm_to_vmem [thread:$0]  %s24, 256, %s26, [#allocation6], 128, 128, 8
    $region5: #{tpu_custom_call.1} parent=1 // pred_fallthru
      _
    // Predicated region
    $region6: #{tpu_custom_call.1} parent=1 // pred_check
      _
    $region7: #{tpu_custom_call.1} parent=1 // pred_check_branch
      %33 = sbr.rel (0) target = $region9
    $region8: #{tpu_custom_call.1} parent=1 // pred_region
      %s34 = sld [smem:[#allocation4]]
      %s36 = ssub.s32 256, 256
      %37 = vsyncadd [#allocation9], %s36
      %s38 = smul.addr %s34, 128
      %s39 = scalar_lea.hbm %s3, %s38
      %s40 = sshll.u32 [#allocation8], 4
      %s41 = int_to_ptr.vmem [resolvable:$true] %s40
      %46 = dma.hbm_to_vmem [thread:$0]  %s39, 256, %s41, [#allocation9], 128, 128, 8
    $region9: #{tpu_custom_call.1} parent=1 // pred_fallthru
      _
    // Predicated region
    $region10: #{tpu_custom_call.1} parent=1 // pred_check
      _
    $region11: #{tpu_custom_call.1} parent=1 // pred_check_branch
      %48 = sbr.rel (0) target = $region13
    $region12: #{tpu_custom_call.1} parent=1 // pred_region
      %s49 = sld [smem:[#allocation3]]
      %s51 = ssub.s32 256, 256
      %52 = vsyncadd [#allocation9], %s51
      %s53 = smul.addr %s49, 128
      %s54 = scalar_lea.hbm %s4, %s53
      %s55 = sshll.u32 [#allocation10], 4
      %s56 = int_to_ptr.vmem [resolvable:$true] %s55
      %61 = dma.hbm_to_vmem [thread:$0]  %s54, 256, %s56, [#allocation9], 128, 128, 8
    $region13: #{tpu_custom_call.1} parent=1 // pred_fallthru
      _
    // Predicated region
    $region14: #{tpu_custom_call.1} parent=1 // pred_check
      _
    $region15: #{tpu_custom_call.1} parent=1 // pred_check_branch
      %63 = sbr.rel (0) target = $region17
    $region16: #{tpu_custom_call.1} parent=1 // pred_region
      %s64 = sld [smem:[#allocation4]]
      %s66 = ssub.s32 256, 256
      %67 = vsyncadd [#allocation12], %s66
      %s68 = smul.addr %s64, 128
      %s69 = scalar_lea.hbm %s5, %s68
      %s70 = sshll.u32 [#allocation11], 4
      %s71 = int_to_ptr.vmem [resolvable:$true] %s70
      %76 = dma.hbm_to_vmem [thread:$0]  %s69, 256, %s71, [#allocation12], 128, 128, 8
    $region17: #{tpu_custom_call.1} parent=1 // pred_fallthru
      _
    // Predicated region
    $region18: #{tpu_custom_call.1} parent=1 // pred_check
      _
    $region19: #{tpu_custom_call.1} parent=1 // pred_check_branch
      %78 = sbr.rel (0) target = $region21
    $region20: #{tpu_custom_call.1} parent=1 // pred_region
      %79 = dma.done [#allocation6], 256
    $region21: #{tpu_custom_call.1} parent=1 // pred_fallthru
      _
    // Predicated region
    $region22: #{tpu_custom_call.1} parent=1 // pred_check
      _
    $region23: #{tpu_custom_call.1} parent=1 // pred_check_branch
      %81 = sbr.rel (0) target = $region25
    $region24: #{tpu_custom_call.1} parent=1 // pred_region
      %82 = dma.done [#allocation9], 256
    $region25: #{tpu_custom_call.1} parent=1 // pred_fallthru
      _
    // Predicated region
    $region26: #{tpu_custom_call.1} parent=1 // pred_check
      _
    $region27: #{tpu_custom_call.1} parent=1 // pred_check_branch
      %84 = sbr.rel (0) target = $region29
    $region28: #{tpu_custom_call.1} parent=1 // pred_region
      %85 = dma.done [#allocation9], 256
    $region29: #{tpu_custom_call.1} parent=1 // pred_fallthru
      _
    // Predicated region
    $region30: #{tpu_custom_call.1} parent=1 // pred_check
      _
    $region31: #{tpu_custom_call.1} parent=1 // pred_check_branch
      %87 = sbr.rel (0) target = $region33
    $region32: #{tpu_custom_call.1} parent=1 // pred_region
      %88 = dma.done [#allocation12], 256
    $region33: #{tpu_custom_call.1} parent=1 // pred_fallthru
      _
    %s89 = sld [smem:[#allocation3]]
    %s90 = sld [smem:[#allocation4]]
    %s91 = sld [smem:[#allocation3]]
    %s92 = sld [smem:[#allocation4]]
    %s93 = sld [smem:[#allocation3]]
    %s94 = sld [smem:[#allocation4]]
    %v95 = vld [vmem:[#allocation5] sm:$0xff]
    %v96 = vld [vmem:[#allocation5 + $0x8] sm:$0xff]
    %v97 = vld [vmem:[#allocation8] sm:$0xff]
    %v98 = vld [vmem:[#allocation8 + $0x8] sm:$0xff]
    %99 = vxpose.xlu0.b32.start [1/16] %v95, 128
    %100 = vxpose.xlu0.b32.cont [2/16] 0.0, 128
    %101 = vxpose.xlu0.b32.cont [3/16] 0.0, 128
    %102 = vxpose.xlu0.b32.cont [4/16] 0.0, 128
    %103 = vxpose.xlu0.b32.cont [5/16] 0.0, 128
    %104 = vxpose.xlu0.b32.cont [6/16] 0.0, 128
    %105 = vxpose.xlu0.b32.cont [7/16] 0.0, 128
    %106 = vxpose.xlu0.b32.cont [8/16] 0.0, 128
    %107 = vxpose.xlu0.b32.cont [9/16] 0.0, 128
    %108 = vxpose.xlu0.b32.cont [10/16] 0.0, 128
    %109 = vxpose.xlu0.b32.cont [11/16] 0.0, 128
    %110 = vxpose.xlu0.b32.cont [12/16] 0.0, 128
    %111 = vxpose.xlu0.b32.cont [13/16] 0.0, 128
    %112 = vxpose.xlu0.b32.cont [14/16] 0.0, 128
    %113 = vxpose.xlu0.b32.cont [15/16] 0.0, 128
    %114 = vxpose.xlu0.b32.end [16/16] 0.0, 128
    %v115 = vpop.trf.xlu0
    %v116 = vpop.trf.xlu0
    %v117 = vpop.trf.xlu0
    %v118 = vpop.trf.xlu0
    %v119 = vpop.trf.xlu0
    %v120 = vpop.trf.xlu0
    %v121 = vpop.trf.xlu0
    %v122 = vpop.trf.xlu0
    %v123 = vpop.trf.xlu0
    %v124 = vpop.trf.xlu0
    %v125 = vpop.trf.xlu0
    %v126 = vpop.trf.xlu0
    %v127 = vpop.trf.xlu0
    %v128 = vpop.trf.xlu0
    %v129 = vpop.trf.xlu0
    %v130 = vpop.trf.xlu0
    %vm131 = vcmask 64512
    %v133 = vsel %vm131, %v115, 0
    %135 = vmatprep.subr.mxu0 0.0
    %136 = vmatpush1.msra.mxu0 0.0
    %137 = vmatprep.subr.mxu0 0.0
    %138 = vmatpush1.msra.mxu0 0.0
    %139 = vmatprep.subr.mxu0 0.0
    %140 = vmatpush1.msra.mxu0 0.0
    %141 = vmatprep.subr.mxu0 0.0
    %142 = vmatpush1.msra.mxu0 0.0
    %143 = vmatprep.subr.mxu0 0.0
    %144 = vmatpush1.msra.mxu0 0.0
    %145 = vmatprep.subr.mxu0 0.0
    %146 = vmatpush1.msra.mxu0 0.0
    %147 = vmatprep.subr.mxu0 0.0
    %148 = vmatpush1.msra.mxu0 0.0
    %149 = vmatprep.subr.mxu0 0.0
    %150 = vmatpush1.msra.mxu0 0.0
    %151 = vmatprep.subr.mxu0 0.0
    %152 = vmatpush1.msra.mxu0 0.0
    %153 = vmatprep.subr.mxu0 0.0
    %154 = vmatpush1.msra.mxu0 0.0
    %155 = vmatprep.subr.mxu0 0.0
    %156 = vmatpush1.msra.mxu0 0.0
    %157 = vmatprep.subr.mxu0 0.0
    %158 = vmatpush1.msra.mxu0 0.0
    %159 = vmatprep.subr.mxu0 0.0
    %160 = vmatpush1.msra.mxu0 0.0
    %161 = vmatprep.subr.mxu0 0.0
    %162 = vmatpush1.msra.mxu0 0.0
    %163 = vmatprep.subr.mxu0 0.0
    %164 = vmatpush1.msra.mxu0 0.0
    %165 = vmatprep.subr.mxu0 0.0
    %v166 = vand.u32 %v97, 4294901760
    %167 = vmatpush1.msra.mxu0 %v166
    %168 = vmatprep.subr.mxu0 0.0
    %169 = vmatpush2.msra.mxu0 0.0
    %170 = vmatprep.subr.mxu0 0.0
    %171 = vmatpush2.msra.mxu0 0.0
    %172 = vmatprep.subr.mxu0 0.0
    %173 = vmatpush2.msra.mxu0 0.0
    %174 = vmatprep.subr.mxu0 0.0
    %175 = vmatpush2.msra.mxu0 0.0
    %176 = vmatprep.subr.mxu0 0.0
    %177 = vmatpush2.msra.mxu0 0.0
    %178 = vmatprep.subr.mxu0 0.0
    %179 = vmatpush2.msra.mxu0 0.0
    %180 = vmatprep.subr.mxu0 0.0
    %181 = vmatpush2.msra.mxu0 0.0
    %182 = vmatprep.subr.mxu0 0.0
    %183 = vmatpush2.msra.mxu0 0.0
    %184 = vmatprep.subr.mxu0 0.0
    %185 = vmatpush2.msra.mxu0 0.0
    %186 = vmatprep.subr.mxu0 0.0
    %187 = vmatpush2.msra.mxu0 0.0
    %188 = vmatprep.subr.mxu0 0.0
    %189 = vmatpush2.msra.mxu0 0.0
    %190 = vmatprep.subr.mxu0 0.0
    %191 = vmatpush2.msra.mxu0 0.0
    %192 = vmatprep.subr.mxu0 0.0
    %193 = vmatpush2.msra.mxu0 0.0
    %194 = vmatprep.subr.mxu0 0.0
    %195 = vmatpush2.msra.mxu0 0.0
    %196 = vmatprep.subr.mxu0 0.0
    %197 = vmatpush2.msra.mxu0 0.0
    %198 = vmatprep.subr.mxu0 0.0
    %199 = vmatpush2.msra.mxu0 0.0
    %200 = vmatprep.mubr.f32.mxu0 0.0
    %v201 = vand.u32 %v133, 4294901760
    %v202 = vsub.f32 %v133, %v201
    %v203 = vand.u32 %v202, 4294901760
    %v204 = vsub.f32 %v202, %v203
    %v205 = vand.u32 %v204, 4294901760
    %206 = vmatmul.mubr.f32.gmra.mxu0 %v205
    %v207 = vpop.f32.mrf.mxu0
    %v208 = vadd.f32 0.0, %v207
    %v209 = vpop.f32.mrf.mxu0
    %210 = vdwg.mxu0
    %211 = vmatprep.subr.mxu0 0.0
    %212 = vmatpush1.msra.mxu0 0.0
    %213 = vmatprep.subr.mxu0 0.0
    %214 = vmatpush1.msra.mxu0 0.0
    %215 = vmatprep.subr.mxu0 0.0
    %216 = vmatpush1.msra.mxu0 0.0
    %217 = vmatprep.subr.mxu0 0.0
    %218 = vmatpush1.msra.mxu0 0.0
    %219 = vmatprep.subr.mxu0 0.0
    %220 = vmatpush1.msra.mxu0 0.0
    %221 = vmatprep.subr.mxu0 0.0
    %222 = vmatpush1.msra.mxu0 0.0
    %223 = vmatprep.subr.mxu0 0.0
    %224 = vmatpush1.msra.mxu0 0.0
    %225 = vmatprep.subr.mxu0 0.0
    %226 = vmatpush1.msra.mxu0 0.0
    %227 = vmatprep.subr.mxu0 0.0
    %228 = vmatpush1.msra.mxu0 0.0
    %229 = vmatprep.subr.mxu0 0.0
    %230 = vmatpush1.msra.mxu0 0.0
    %231 = vmatprep.subr.mxu0 0.0
    %232 = vmatpush1.msra.mxu0 0.0
    %233 = vmatprep.subr.mxu0 0.0
    %234 = vmatpush1.msra.mxu0 0.0
    %235 = vmatprep.subr.mxu0 0.0
    %236 = vmatpush1.msra.mxu0 0.0
    %237 = vmatprep.subr.mxu0 0.0
    %238 = vmatpush1.msra.mxu0 0.0
    %239 = vmatprep.subr.mxu0 0.0
    %240 = vmatpush1.msra.mxu0 0.0
    %241 = vmatprep.subr.mxu0 0.0
    %v242 = vand.u32 %v97, 4294901760
    %v243 = vsub.f32 %v97, %v242
    %v244 = vand.u32 %v243, 4294901760
    %v245 = vsub.f32 %v243, %v244
    %v246 = vand.u32 %v245, 4294901760
    %247 = vmatpush1.msra.mxu0 %v246
    %248 = vmatprep.subr.mxu0 0.0
    %249 = vmatpush2.msra.mxu0 0.0
    %250 = vmatprep.subr.mxu0 0.0
    %251 = vmatpush2.msra.mxu0 0.0
    %252 = vmatprep.subr.mxu0 0.0
    %253 = vmatpush2.msra.mxu0 0.0
    %254 = vmatprep.subr.mxu0 0.0
    %255 = vmatpush2.msra.mxu0 0.0
    %256 = vmatprep.subr.mxu0 0.0
    %257 = vmatpush2.msra.mxu0 0.0
    %258 = vmatprep.subr.mxu0 0.0
    %259 = vmatpush2.msra.mxu0 0.0
    %260 = vmatprep.subr.mxu0 0.0
    %261 = vmatpush2.msra.mxu0 0.0
    %262 = vmatprep.subr.mxu0 0.0
    %263 = vmatpush2.msra.mxu0 0.0
    %264 = vmatprep.subr.mxu0 0.0
    %265 = vmatpush2.msra.mxu0 0.0
    %266 = vmatprep.subr.mxu0 0.0
    %267 = vmatpush2.msra.mxu0 0.0
    %268 = vmatprep.subr.mxu0 0.0
    %269 = vmatpush2.msra.mxu0 0.0
    %270 = vmatprep.subr.mxu0 0.0
    %271 = vmatpush2.msra.mxu0 0.0
    %272 = vmatprep.subr.mxu0 0.0
    %273 = vmatpush2.msra.mxu0 0.0
    %274 = vmatprep.subr.mxu0 0.0
    %275 = vmatpush2.msra.mxu0 0.0
    %276 = vmatprep.subr.mxu0 0.0
    %277 = vmatpush2.msra.mxu0 0.0
    %278 = vmatprep.subr.mxu0 0.0
    %279 = vmatpush2.msra.mxu0 0.0
    %280 = vmatprep.mubr.f32.mxu0 0.0
    %v281 = vand.u32 %v133, 4294901760
    %282 = vmatmul.mubr.f32.gmra.mxu0 %v281
    %v283 = vpop.f32.mrf.mxu0
    %v284 = vadd.f32 %v208, %v283
    %v285 = vpop.f32.mrf.mxu0
    %286 = vdwg.mxu0
    %287 = vmatprep.subr.mxu0 0.0
    %288 = vmatpush1.msra.mxu0 0.0
    %289 = vmatprep.subr.mxu0 0.0
    %290 = vmatpush1.msra.mxu0 0.0
    %291 = vmatprep.subr.mxu0 0.0
    %292 = vmatpush1.msra.mxu0 0.0
    %293 = vmatprep.subr.mxu0 0.0
    %294 = vmatpush1.msra.mxu0 0.0
    %295 = vmatprep.subr.mxu0 0.0
    %296 = vmatpush1.msra.mxu0 0.0
    %297 = vmatprep.subr.mxu0 0.0
    %298 = vmatpush1.msra.mxu0 0.0
    %299 = vmatprep.subr.mxu0 0.0
    %300 = vmatpush1.msra.mxu0 0.0
    %301 = vmatprep.subr.mxu0 0.0
    %302 = vmatpush1.msra.mxu0 0.0
    %303 = vmatprep.subr.mxu0 0.0
    %304 = vmatpush1.msra.mxu0 0.0
    %305 = vmatprep.subr.mxu0 0.0
    %306 = vmatpush1.msra.mxu0 0.0
    %307 = vmatprep.subr.mxu0 0.0
    %308 = vmatpush1.msra.mxu0 0.0
    %309 = vmatprep.subr.mxu0 0.0
    %310 = vmatpush1.msra.mxu0 0.0
    %311 = vmatprep.subr.mxu0 0.0
    %312 = vmatpush1.msra.mxu0 0.0
    %313 = vmatprep.subr.mxu0 0.0
    %314 = vmatpush1.msra.mxu0 0.0
    %315 = vmatprep.subr.mxu0 0.0
    %316 = vmatpush1.msra.mxu0 0.0
    %317 = vmatprep.subr.mxu0 0.0
    %v318 = vand.u32 %v97, 4294901760
    %v319 = vsub.f32 %v97, %v318
    %320 = vmatpush1.msra.mxu0 %v319
    %321 = vmatprep.subr.mxu0 0.0
    %322 = vmatpush2.msra.mxu0 0.0
    %323 = vmatprep.subr.mxu0 0.0
    %324 = vmatpush2.msra.mxu0 0.0
    %325 = vmatprep.subr.mxu0 0.0
    %326 = vmatpush2.msra.mxu0 0.0
    %327 = vmatprep.subr.mxu0 0.0
    %328 = vmatpush2.msra.mxu0 0.0
    %329 = vmatprep.subr.mxu0 0.0
    %330 = vmatpush2.msra.mxu0 0.0
    %331 = vmatprep.subr.mxu0 0.0
    %332 = vmatpush2.msra.mxu0 0.0
    %333 = vmatprep.subr.mxu0 0.0
    %334 = vmatpush2.msra.mxu0 0.0
    %335 = vmatprep.subr.mxu0 0.0
    %336 = vmatpush2.msra.mxu0 0.0
    %337 = vmatprep.subr.mxu0 0.0
    %338 = vmatpush2.msra.mxu0 0.0
    %339 = vmatprep.subr.mxu0 0.0
    %340 = vmatpush2.msra.mxu0 0.0
    %341 = vmatprep.subr.mxu0 0.0
    %342 = vmatpush2.msra.mxu0 0.0
    %343 = vmatprep.subr.mxu0 0.0
    %344 = vmatpush2.msra.mxu0 0.0
    %345 = vmatprep.subr.mxu0 0.0
    %346 = vmatpush2.msra.mxu0 0.0
    %347 = vmatprep.subr.mxu0 0.0
    %348 = vmatpush2.msra.mxu0 0.0
    %349 = vmatprep.subr.mxu0 0.0
    %350 = vmatpush2.msra.mxu0 0.0
    %351 = vmatprep.subr.mxu0 0.0
    %352 = vmatpush2.msra.mxu0 0.0
    %353 = vmatprep.mubr.f32.mxu0 0.0
    %v354 = vand.u32 %v133, 4294901760
    %v355 = vsub.f32 %v133, %v354
    %356 = vmatmul.mubr.f32.gmra.mxu0 %v355
    %v357 = vpop.f32.mrf.mxu0
    %v358 = vadd.f32 %v284, %v357
    %v359 = vpop.f32.mrf.mxu0
    %360 = vdwg.mxu0
    %361 = vmatprep.subr.mxu0 0.0
    %362 = vmatpush1.msra.mxu0 0.0
    %363 = vmatprep.subr.mxu0 0.0
    %364 = vmatpush1.msra.mxu0 0.0
    %365 = vmatprep.subr.mxu0 0.0
    %366 = vmatpush1.msra.mxu0 0.0
    %367 = vmatprep.subr.mxu0 0.0
    %368 = vmatpush1.msra.mxu0 0.0
    %369 = vmatprep.subr.mxu0 0.0
    %370 = vmatpush1.msra.mxu0 0.0
    %371 = vmatprep.subr.mxu0 0.0
    %372 = vmatpush1.msra.mxu0 0.0
    %373 = vmatprep.subr.mxu0 0.0
    %374 = vmatpush1.msra.mxu0 0.0
    %375 = vmatprep.subr.mxu0 0.0
    %376 = vmatpush1.msra.mxu0 0.0
    %377 = vmatprep.subr.mxu0 0.0
    %378 = vmatpush1.msra.mxu0 0.0
    %379 = vmatprep.subr.mxu0 0.0
    %380 = vmatpush1.msra.mxu0 0.0
    %381 = vmatprep.subr.mxu0 0.0
    %382 = vmatpush1.msra.mxu0 0.0
    %383 = vmatprep.subr.mxu0 0.0
    %384 = vmatpush1.msra.mxu0 0.0
    %385 = vmatprep.subr.mxu0 0.0
    %386 = vmatpush1.msra.mxu0 0.0
    %387 = vmatprep.subr.mxu0 0.0
    %388 = vmatpush1.msra.mxu0 0.0
    %389 = vmatprep.subr.mxu0 0.0
    %390 = vmatpush1.msra.mxu0 0.0
    %391 = vmatprep.subr.mxu0 0.0
    %v392 = vand.u32 %v97, 4294901760
    %393 = vmatpush1.msra.mxu0 %v392
    %394 = vmatprep.subr.mxu0 0.0
    %395 = vmatpush2.msra.mxu0 0.0
    %396 = vmatprep.subr.mxu0 0.0
    %397 = vmatpush2.msra.mxu0 0.0
    %398 = vmatprep.subr.mxu0 0.0
    %399 = vmatpush2.msra.mxu0 0.0
    %400 = vmatprep.subr.mxu0 0.0
    %401 = vmatpush2.msra.mxu0 0.0
    %402 = vmatprep.subr.mxu0 0.0
    %403 = vmatpush2.msra.mxu0 0.0
    %404 = vmatprep.subr.mxu0 0.0
    %405 = vmatpush2.msra.mxu0 0.0
    %406 = vmatprep.subr.mxu0 0.0
    %407 = vmatpush2.msra.mxu0 0.0
    %408 = vmatprep.subr.mxu0 0.0
    %409 = vmatpush2.msra.mxu0 0.0
    %410 = vmatprep.subr.mxu0 0.0
    %411 = vmatpush2.msra.mxu0 0.0
    %412 = vmatprep.subr.mxu0 0.0
    %413 = vmatpush2.msra.mxu0 0.0
    %414 = vmatprep.subr.mxu0 0.0
    %415 = vmatpush2.msra.mxu0 0.0
    %416 = vmatprep.subr.mxu0 0.0
    %417 = vmatpush2.msra.mxu0 0.0
    %418 = vmatprep.subr.mxu0 0.0
    %419 = vmatpush2.msra.mxu0 0.0
    %420 = vmatprep.subr.mxu0 0.0
    %421 = vmatpush2.msra.mxu0 0.0
    %422 = vmatprep.subr.mxu0 0.0
    %423 = vmatpush2.msra.mxu0 0.0
    %424 = vmatprep.subr.mxu0 0.0
    %425 = vmatpush2.msra.mxu0 0.0
    %426 = vmatprep.mubr.f32.mxu0 0.0
    %v427 = vand.u32 %v133, 4294901760
    %v428 = vsub.f32 %v133, %v427
    %v429 = vand.u32 %v428, 4294901760
    %430 = vmatmul.mubr.f32.gmra.mxu0 %v429
    %v431 = vpop.f32.mrf.mxu0
    %v432 = vadd.f32 %v358, %v431
    %v433 = vpop.f32.mrf.mxu0
    %434 = vdwg.mxu0
    %435 = vmatprep.subr.mxu0 0.0
    %436 = vmatpush1.msra.mxu0 0.0
    %437 = vmatprep.subr.mxu0 0.0
    %438 = vmatpush1.msra.mxu0 0.0
    %439 = vmatprep.subr.mxu0 0.0
    %440 = vmatpush1.msra.mxu0 0.0
    %441 = vmatprep.subr.mxu0 0.0
    %442 = vmatpush1.msra.mxu0 0.0
    %443 = vmatprep.subr.mxu0 0.0
    %444 = vmatpush1.msra.mxu0 0.0
    %445 = vmatprep.subr.mxu0 0.0
    %446 = vmatpush1.msra.mxu0 0.0
    %447 = vmatprep.subr.mxu0 0.0
    %448 = vmatpush1.msra.mxu0 0.0
    %449 = vmatprep.subr.mxu0 0.0
    %450 = vmatpush1.msra.mxu0 0.0
    %451 = vmatprep.subr.mxu0 0.0
    %452 = vmatpush1.msra.mxu0 0.0
    %453 = vmatprep.subr.mxu0 0.0
    %454 = vmatpush1.msra.mxu0 0.0
    %455 = vmatprep.subr.mxu0 0.0
    %456 = vmatpush1.msra.mxu0 0.0
    %457 = vmatprep.subr.mxu0 0.0
    %458 = vmatpush1.msra.mxu0 0.0
    %459 = vmatprep.subr.mxu0 0.0
    %460 = vmatpush1.msra.mxu0 0.0
    %461 = vmatprep.subr.mxu0 0.0
    %462 = vmatpush1.msra.mxu0 0.0
    %463 = vmatprep.subr.mxu0 0.0
    %464 = vmatpush1.msra.mxu0 0.0
    %465 = vmatprep.subr.mxu0 0.0
    %v466 = vand.u32 %v97, 4294901760
    %v467 = vsub.f32 %v97, %v466
    %v468 = vand.u32 %v467, 4294901760
    %469 = vmatpush1.msra.mxu0 %v468
    %470 = vmatprep.subr.mxu0 0.0
    %471 = vmatpush2.msra.mxu0 0.0
    %472 = vmatprep.subr.mxu0 0.0
    %473 = vmatpush2.msra.mxu0 0.0
    %474 = vmatprep.subr.mxu0 0.0
    %475 = vmatpush2.msra.mxu0 0.0
    %476 = vmatprep.subr.mxu0 0.0
    %477 = vmatpush2.msra.mxu0 0.0
    %478 = vmatprep.subr.mxu0 0.0
    %479 = vmatpush2.msra.mxu0 0.0
    %480 = vmatprep.subr.mxu0 0.0
    %481 = vmatpush2.msra.mxu0 0.0
    %482 = vmatprep.subr.mxu0 0.0
    %483 = vmatpush2.msra.mxu0 0.0
    %484 = vmatprep.subr.mxu0 0.0
    %485 = vmatpush2.msra.mxu0 0.0
    %486 = vmatprep.subr.mxu0 0.0
    %487 = vmatpush2.msra.mxu0 0.0
    %488 = vmatprep.subr.mxu0 0.0
    %489 = vmatpush2.msra.mxu0 0.0
    %490 = vmatprep.subr.mxu0 0.0
    %491 = vmatpush2.msra.mxu0 0.0
    %492 = vmatprep.subr.mxu0 0.0
    %493 = vmatpush2.msra.mxu0 0.0
    %494 = vmatprep.subr.mxu0 0.0
    %495 = vmatpush2.msra.mxu0 0.0
    %496 = vmatprep.subr.mxu0 0.0
    %497 = vmatpush2.msra.mxu0 0.0
    %498 = vmatprep.subr.mxu0 0.0
    %499 = vmatpush2.msra.mxu0 0.0
    %500 = vmatprep.subr.mxu0 0.0
    %501 = vmatpush2.msra.mxu0 0.0
    %502 = vmatprep.mubr.f32.mxu0 0.0
    %v503 = vand.u32 %v133, 4294901760
    %504 = vmatmul.mubr.f32.gmra.mxu0 %v503
    %v505 = vpop.f32.mrf.mxu0
    %v506 = vadd.f32 %v432, %v505
    %v507 = vpop.f32.mrf.mxu0
    %508 = vdwg.mxu0
    %509 = vmatprep.subr.mxu0 0.0
    %510 = vmatpush1.msra.mxu0 0.0
    %511 = vmatprep.subr.mxu0 0.0
    %512 = vmatpush1.msra.mxu0 0.0
    %513 = vmatprep.subr.mxu0 0.0
    %514 = vmatpush1.msra.mxu0 0.0
    %515 = vmatprep.subr.mxu0 0.0
    %516 = vmatpush1.msra.mxu0 0.0
    %517 = vmatprep.subr.mxu0 0.0
    %518 = vmatpush1.msra.mxu0 0.0
    %519 = vmatprep.subr.mxu0 0.0
    %520 = vmatpush1.msra.mxu0 0.0
    %521 = vmatprep.subr.mxu0 0.0
    %522 = vmatpush1.msra.mxu0 0.0
    %523 = vmatprep.subr.mxu0 0.0
    %524 = vmatpush1.msra.mxu0 0.0
    %525 = vmatprep.subr.mxu0 0.0
    %526 = vmatpush1.msra.mxu0 0.0
    %527 = vmatprep.subr.mxu0 0.0
    %528 = vmatpush1.msra.mxu0 0.0
    %529 = vmatprep.subr.mxu0 0.0
    %530 = vmatpush1.msra.mxu0 0.0
    %531 = vmatprep.subr.mxu0 0.0
    %532 = vmatpush1.msra.mxu0 0.0
    %533 = vmatprep.subr.mxu0 0.0
    %534 = vmatpush1.msra.mxu0 0.0
    %535 = vmatprep.subr.mxu0 0.0
    %536 = vmatpush1.msra.mxu0 0.0
    %537 = vmatprep.subr.mxu0 0.0
    %538 = vmatpush1.msra.mxu0 0.0
    %539 = vmatprep.subr.mxu0 0.0
    %v540 = vand.u32 %v97, 4294901760
    %541 = vmatpush1.msra.mxu0 %v540
    %542 = vmatprep.subr.mxu0 0.0
    %543 = vmatpush2.msra.mxu0 0.0
    %544 = vmatprep.subr.mxu0 0.0
    %545 = vmatpush2.msra.mxu0 0.0
    %546 = vmatprep.subr.mxu0 0.0
    %547 = vmatpush2.msra.mxu0 0.0
    %548 = vmatprep.subr.mxu0 0.0
    %549 = vmatpush2.msra.mxu0 0.0
    %550 = vmatprep.subr.mxu0 0.0
    %551 = vmatpush2.msra.mxu0 0.0
    %552 = vmatprep.subr.mxu0 0.0
    %553 = vmatpush2.msra.mxu0 0.0
    %554 = vmatprep.subr.mxu0 0.0
    %555 = vmatpush2.msra.mxu0 0.0
    %556 = vmatprep.subr.mxu0 0.0
    %557 = vmatpush2.msra.mxu0 0.0
    %558 = vmatprep.subr.mxu0 0.0
    %559 = vmatpush2.msra.mxu0 0.0
    %560 = vmatprep.subr.mxu0 0.0
    %561 = vmatpush2.msra.mxu0 0.0
    %562 = vmatprep.subr.mxu0 0.0
    %563 = vmatpush2.msra.mxu0 0.0
    %564 = vmatprep.subr.mxu0 0.0
    %565 = vmatpush2.msra.mxu0 0.0
    %566 = vmatprep.subr.mxu0 0.0
    %567 = vmatpush2.msra.mxu0 0.0
    %568 = vmatprep.subr.mxu0 0.0
    %569 = vmatpush2.msra.mxu0 0.0
    %570 = vmatprep.subr.mxu0 0.0
    %571 = vmatpush2.msra.mxu0 0.0
    %572 = vmatprep.subr.mxu0 0.0
    %573 = vmatpush2.msra.mxu0 0.0
    %574 = vmatprep.mubr.f32.mxu0 0.0
    %v575 = vand.u32 %v133, 4294901760
    %576 = vmatmul.mubr.f32.gmra.mxu0 %v575
    %v577 = vpop.f32.mrf.mxu0
    %v578 = vadd.f32 %v506, %v577
    %v579 = vpop.f32.mrf.mxu0
    %580 = vdwg.mxu0
    %581 = vxpose.xlu0.b32.start [1/16] %v96, 128
    %582 = vxpose.xlu0.b32.cont [2/16] 0.0, 128
    %583 = vxpose.xlu0.b32.cont [3/16] 0.0, 128
    %584 = vxpose.xlu0.b32.cont [4/16] 0.0, 128
    %585 = vxpose.xlu0.b32.cont [5/16] 0.0, 128
    %586 = vxpose.xlu0.b32.cont [6/16] 0.0, 128
    %587 = vxpose.xlu0.b32.cont [7/16] 0.0, 128
    %588 = vxpose.xlu0.b32.cont [8/16] 0.0, 128
    %589 = vxpose.xlu0.b32.cont [9/16] 0.0, 128
    %590 = vxpose.xlu0.b32.cont [10/16] 0.0, 128
    %591 = vxpose.xlu0.b32.cont [11/16] 0.0, 128
    %592 = vxpose.xlu0.b32.cont [12/16] 0.0, 128
    %593 = vxpose.xlu0.b32.cont [13/16] 0.0, 128
    %594 = vxpose.xlu0.b32.cont [14/16] 0.0, 128
    %595 = vxpose.xlu0.b32.cont [15/16] 0.0, 128
    %596 = vxpose.xlu0.b32.end [16/16] 0.0, 128
    %v597 = vpop.trf.xlu0
    %v598 = vpop.trf.xlu0
    %v599 = vpop.trf.xlu0
    %v600 = vpop.trf.xlu0
    %v601 = vpop.trf.xlu0
    %v602 = vpop.trf.xlu0
    %v603 = vpop.trf.xlu0
    %v604 = vpop.trf.xlu0
    %v605 = vpop.trf.xlu0
    %v606 = vpop.trf.xlu0
    %v607 = vpop.trf.xlu0
    %v608 = vpop.trf.xlu0
    %v609 = vpop.trf.xlu0
    %v610 = vpop.trf.xlu0
    %v611 = vpop.trf.xlu0
    %v612 = vpop.trf.xlu0
    %v614 = vsel %vm131, %v597, 0
    %616 = vmatprep.subr.mxu0 0.0
    %617 = vmatpush1.msra.mxu0 0.0
    %618 = vmatprep.subr.mxu0 0.0
    %619 = vmatpush1.msra.mxu0 0.0
    %620 = vmatprep.subr.mxu0 0.0
    %621 = vmatpush1.msra.mxu0 0.0
    %622 = vmatprep.subr.mxu0 0.0
    %623 = vmatpush1.msra.mxu0 0.0
    %624 = vmatprep.subr.mxu0 0.0
    %625 = vmatpush1.msra.mxu0 0.0
    %626 = vmatprep.subr.mxu0 0.0
    %627 = vmatpush1.msra.mxu0 0.0
    %628 = vmatprep.subr.mxu0 0.0
    %629 = vmatpush1.msra.mxu0 0.0
    %630 = vmatprep.subr.mxu0 0.0
    %631 = vmatpush1.msra.mxu0 0.0
    %632 = vmatprep.subr.mxu0 0.0
    %633 = vmatpush1.msra.mxu0 0.0
    %634 = vmatprep.subr.mxu0 0.0
    %635 = vmatpush1.msra.mxu0 0.0
    %636 = vmatprep.subr.mxu0 0.0
    %637 = vmatpush1.msra.mxu0 0.0
    %638 = vmatprep.subr.mxu0 0.0
    %639 = vmatpush1.msra.mxu0 0.0
    %640 = vmatprep.subr.mxu0 0.0
    %641 = vmatpush1.msra.mxu0 0.0
    %642 = vmatprep.subr.mxu0 0.0
    %643 = vmatpush1.msra.mxu0 0.0
    %644 = vmatprep.subr.mxu0 0.0
    %645 = vmatpush1.msra.mxu0 0.0
    %646 = vmatprep.subr.mxu0 0.0
    %v647 = vand.u32 %v98, 4294901760
    %648 = vmatpush1.msra.mxu0 %v647
    %649 = vmatprep.subr.mxu0 0.0
    %650 = vmatpush2.msra.mxu0 0.0
    %651 = vmatprep.subr.mxu0 0.0
    %652 = vmatpush2.msra.mxu0 0.0
    %653 = vmatprep.subr.mxu0 0.0
    %654 = vmatpush2.msra.mxu0 0.0
    %655 = vmatprep.subr.mxu0 0.0
    %656 = vmatpush2.msra.mxu0 0.0
    %657 = vmatprep.subr.mxu0 0.0
    %658 = vmatpush2.msra.mxu0 0.0
    %659 = vmatprep.subr.mxu0 0.0
    %660 = vmatpush2.msra.mxu0 0.0
    %661 = vmatprep.subr.mxu0 0.0
    %662 = vmatpush2.msra.mxu0 0.0
    %663 = vmatprep.subr.mxu0 0.0
    %664 = vmatpush2.msra.mxu0 0.0
    %665 = vmatprep.subr.mxu0 0.0
    %666 = vmatpush2.msra.mxu0 0.0
    %667 = vmatprep.subr.mxu0 0.0
    %668 = vmatpush2.msra.mxu0 0.0
    %669 = vmatprep.subr.mxu0 0.0
    %670 = vmatpush2.msra.mxu0 0.0
    %671 = vmatprep.subr.mxu0 0.0
    %672 = vmatpush2.msra.mxu0 0.0
    %673 = vmatprep.subr.mxu0 0.0
    %674 = vmatpush2.msra.mxu0 0.0
    %675 = vmatprep.subr.mxu0 0.0
    %676 = vmatpush2.msra.mxu0 0.0
    %677 = vmatprep.subr.mxu0 0.0
    %678 = vmatpush2.msra.mxu0 0.0
    %679 = vmatprep.subr.mxu0 0.0
    %680 = vmatpush2.msra.mxu0 0.0
    %681 = vmatprep.mubr.f32.mxu0 0.0
    %v682 = vand.u32 %v614, 4294901760
    %v683 = vsub.f32 %v614, %v682
    %v684 = vand.u32 %v683, 4294901760
    %v685 = vsub.f32 %v683, %v684
    %v686 = vand.u32 %v685, 4294901760
    %687 = vmatmul.mubr.f32.gmra.mxu0 %v686
    %v688 = vpop.f32.mrf.mxu0
    %v689 = vadd.f32 0.0, %v688
    %v690 = vpop.f32.mrf.mxu0
    %691 = vdwg.mxu0
    %692 = vmatprep.subr.mxu0 0.0
    %693 = vmatpush1.msra.mxu0 0.0
    %694 = vmatprep.subr.mxu0 0.0
    %695 = vmatpush1.msra.mxu0 0.0
    %696 = vmatprep.subr.mxu0 0.0
    %697 = vmatpush1.msra.mxu0 0.0
    %698 = vmatprep.subr.mxu0 0.0
    %699 = vmatpush1.msra.mxu0 0.0
    %700 = vmatprep.subr.mxu0 0.0
    %701 = vmatpush1.msra.mxu0 0.0
    %702 = vmatprep.subr.mxu0 0.0
    %703 = vmatpush1.msra.mxu0 0.0
    %704 = vmatprep.subr.mxu0 0.0
    %705 = vmatpush1.msra.mxu0 0.0
    %706 = vmatprep.subr.mxu0 0.0
    %707 = vmatpush1.msra.mxu0 0.0
    %708 = vmatprep.subr.mxu0 0.0
    %709 = vmatpush1.msra.mxu0 0.0
    %710 = vmatprep.subr.mxu0 0.0
    %711 = vmatpush1.msra.mxu0 0.0
    %712 = vmatprep.subr.mxu0 0.0
    %713 = vmatpush1.msra.mxu0 0.0
    %714 = vmatprep.subr.mxu0 0.0
    %715 = vmatpush1.msra.mxu0 0.0
    %716 = vmatprep.subr.mxu0 0.0
    %717 = vmatpush1.msra.mxu0 0.0
    %718 = vmatprep.subr.mxu0 0.0
    %719 = vmatpush1.msra.mxu0 0.0
    %720 = vmatprep.subr.mxu0 0.0
    %721 = vmatpush1.msra.mxu0 0.0
    %722 = vmatprep.subr.mxu0 0.0
    %v723 = vand.u32 %v98, 4294901760
    %v724 = vsub.f32 %v98, %v723
    %v725 = vand.u32 %v724, 4294901760
    %v726 = vsub.f32 %v724, %v725
    %v727 = vand.u32 %v726, 4294901760
    %728 = vmatpush1.msra.mxu0 %v727
    %729 = vmatprep.subr.mxu0 0.0
    %730 = vmatpush2.msra.mxu0 0.0
    %731 = vmatprep.subr.mxu0 0.0
    %732 = vmatpush2.msra.mxu0 0.0
    %733 = vmatprep.subr.mxu0 0.0
    %734 = vmatpush2.msra.mxu0 0.0
    %735 = vmatprep.subr.mxu0 0.0
    %736 = vmatpush2.msra.mxu0 0.0
    %737 = vmatprep.subr.mxu0 0.0
    %738 = vmatpush2.msra.mxu0 0.0
    %739 = vmatprep.subr.mxu0 0.0
    %740 = vmatpush2.msra.mxu0 0.0
    %741 = vmatprep.subr.mxu0 0.0
    %742 = vmatpush2.msra.mxu0 0.0
    %743 = vmatprep.subr.mxu0 0.0
    %744 = vmatpush2.msra.mxu0 0.0
    %745 = vmatprep.subr.mxu0 0.0
    %746 = vmatpush2.msra.mxu0 0.0
    %747 = vmatprep.subr.mxu0 0.0
    %748 = vmatpush2.msra.mxu0 0.0
    %749 = vmatprep.subr.mxu0 0.0
    %750 = vmatpush2.msra.mxu0 0.0
    %751 = vmatprep.subr.mxu0 0.0
    %752 = vmatpush2.msra.mxu0 0.0
    %753 = vmatprep.subr.mxu0 0.0
    %754 = vmatpush2.msra.mxu0 0.0
    %755 = vmatprep.subr.mxu0 0.0
    %756 = vmatpush2.msra.mxu0 0.0
    %757 = vmatprep.subr.mxu0 0.0
    %758 = vmatpush2.msra.mxu0 0.0
    %759 = vmatprep.subr.mxu0 0.0
    %760 = vmatpush2.msra.mxu0 0.0
    %761 = vmatprep.mubr.f32.mxu0 0.0
    %v762 = vand.u32 %v614, 4294901760
    %763 = vmatmul.mubr.f32.gmra.mxu0 %v762
    %v764 = vpop.f32.mrf.mxu0
    %v765 = vadd.f32 %v689, %v764
    %v766 = vpop.f32.mrf.mxu0
    %767 = vdwg.mxu0
    %768 = vmatprep.subr.mxu0 0.0
    %769 = vmatpush1.msra.mxu0 0.0
    %770 = vmatprep.subr.mxu0 0.0
    %771 = vmatpush1.msra.mxu0 0.0
    %772 = vmatprep.subr.mxu0 0.0
    %773 = vmatpush1.msra.mxu0 0.0
    %774 = vmatprep.subr.mxu0 0.0
    %775 = vmatpush1.msra.mxu0 0.0
    %776 = vmatprep.subr.mxu0 0.0
    %777 = vmatpush1.msra.mxu0 0.0
    %778 = vmatprep.subr.mxu0 0.0
    %779 = vmatpush1.msra.mxu0 0.0
    %780 = vmatprep.subr.mxu0 0.0
    %781 = vmatpush1.msra.mxu0 0.0
    %782 = vmatprep.subr.mxu0 0.0
    %783 = vmatpush1.msra.mxu0 0.0
    %784 = vmatprep.subr.mxu0 0.0
    %785 = vmatpush1.msra.mxu0 0.0
    %786 = vmatprep.subr.mxu0 0.0
    %787 = vmatpush1.msra.mxu0 0.0
    %788 = vmatprep.subr.mxu0 0.0
    %789 = vmatpush1.msra.mxu0 0.0
    %790 = vmatprep.subr.mxu0 0.0
    %791 = vmatpush1.msra.mxu0 0.0
    %792 = vmatprep.subr.mxu0 0.0
    %793 = vmatpush1.msra.mxu0 0.0
    %794 = vmatprep.subr.mxu0 0.0
    %795 = vmatpush1.msra.mxu0 0.0
    %796 = vmatprep.subr.mxu0 0.0
    %797 = vmatpush1.msra.mxu0 0.0
    %798 = vmatprep.subr.mxu0 0.0
    %v799 = vand.u32 %v98, 4294901760
    %v800 = vsub.f32 %v98, %v799
    %801 = vmatpush1.msra.mxu0 %v800
    %802 = vmatprep.subr.mxu0 0.0
    %803 = vmatpush2.msra.mxu0 0.0
    %804 = vmatprep.subr.mxu0 0.0
    %805 = vmatpush2.msra.mxu0 0.0
    %806 = vmatprep.subr.mxu0 0.0
    %807 = vmatpush2.msra.mxu0 0.0
    %808 = vmatprep.subr.mxu0 0.0
    %809 = vmatpush2.msra.mxu0 0.0
    %810 = vmatprep.subr.mxu0 0.0
    %811 = vmatpush2.msra.mxu0 0.0
    %812 = vmatprep.subr.mxu0 0.0
    %813 = vmatpush2.msra.mxu0 0.0
    %814 = vmatprep.subr.mxu0 0.0
    %815 = vmatpush2.msra.mxu0 0.0
    %816 = vmatprep.subr.mxu0 0.0
    %817 = vmatpush2.msra.mxu0 0.0
    %818 = vmatprep.subr.mxu0 0.0
    %819 = vmatpush2.msra.mxu0 0.0
    %820 = vmatprep.subr.mxu0 0.0
    %821 = vmatpush2.msra.mxu0 0.0
    %822 = vmatprep.subr.mxu0 0.0
    %823 = vmatpush2.msra.mxu0 0.0
    %824 = vmatprep.subr.mxu0 0.0
    %825 = vmatpush2.msra.mxu0 0.0
    %826 = vmatprep.subr.mxu0 0.0
    %827 = vmatpush2.msra.mxu0 0.0
    %828 = vmatprep.subr.mxu0 0.0
    %829 = vmatpush2.msra.mxu0 0.0
    %830 = vmatprep.subr.mxu0 0.0
    %831 = vmatpush2.msra.mxu0 0.0
    %832 = vmatprep.subr.mxu0 0.0
    %833 = vmatpush2.msra.mxu0 0.0
    %834 = vmatprep.mubr.f32.mxu0 0.0
    %v835 = vand.u32 %v614, 4294901760
    %v836 = vsub.f32 %v614, %v835
    %837 = vmatmul.mubr.f32.gmra.mxu0 %v836
    %v838 = vpop.f32.mrf.mxu0
    %v839 = vadd.f32 %v765, %v838
    %v840 = vpop.f32.mrf.mxu0
    %841 = vdwg.mxu0
    %842 = vmatprep.subr.mxu0 0.0
    %843 = vmatpush1.msra.mxu0 0.0
    %844 = vmatprep.subr.mxu0 0.0
    %845 = vmatpush1.msra.mxu0 0.0
    %846 = vmatprep.subr.mxu0 0.0
    %847 = vmatpush1.msra.mxu0 0.0
    %848 = vmatprep.subr.mxu0 0.0
    %849 = vmatpush1.msra.mxu0 0.0
    %850 = vmatprep.subr.mxu0 0.0
    %851 = vmatpush1.msra.mxu0 0.0
    %852 = vmatprep.subr.mxu0 0.0
    %853 = vmatpush1.msra.mxu0 0.0
    %854 = vmatprep.subr.mxu0 0.0
    %855 = vmatpush1.msra.mxu0 0.0
    %856 = vmatprep.subr.mxu0 0.0
    %857 = vmatpush1.msra.mxu0 0.0
    %858 = vmatprep.subr.mxu0 0.0
    %859 = vmatpush1.msra.mxu0 0.0
    %860 = vmatprep.subr.mxu0 0.0
    %861 = vmatpush1.msra.mxu0 0.0
    %862 = vmatprep.subr.mxu0 0.0
    %863 = vmatpush1.msra.mxu0 0.0
    %864 = vmatprep.subr.mxu0 0.0
    %865 = vmatpush1.msra.mxu0 0.0
    %866 = vmatprep.subr.mxu0 0.0
    %867 = vmatpush1.msra.mxu0 0.0
    %868 = vmatprep.subr.mxu0 0.0
    %869 = vmatpush1.msra.mxu0 0.0
    %870 = vmatprep.subr.mxu0 0.0
    %871 = vmatpush1.msra.mxu0 0.0
    %872 = vmatprep.subr.mxu0 0.0
    %v873 = vand.u32 %v98, 4294901760
    %874 = vmatpush1.msra.mxu0 %v873
    %875 = vmatprep.subr.mxu0 0.0
    %876 = vmatpush2.msra.mxu0 0.0
    %877 = vmatprep.subr.mxu0 0.0
    %878 = vmatpush2.msra.mxu0 0.0
    %879 = vmatprep.subr.mxu0 0.0
    %880 = vmatpush2.msra.mxu0 0.0
    %881 = vmatprep.subr.mxu0 0.0
    %882 = vmatpush2.msra.mxu0 0.0
    %883 = vmatprep.subr.mxu0 0.0
    %884 = vmatpush2.msra.mxu0 0.0
    %885 = vmatprep.subr.mxu0 0.0
    %886 = vmatpush2.msra.mxu0 0.0
    %887 = vmatprep.subr.mxu0 0.0
    %888 = vmatpush2.msra.mxu0 0.0
    %889 = vmatprep.subr.mxu0 0.0
    %890 = vmatpush2.msra.mxu0 0.0
    %891 = vmatprep.subr.mxu0 0.0
    %892 = vmatpush2.msra.mxu0 0.0
    %893 = vmatprep.subr.mxu0 0.0
    %894 = vmatpush2.msra.mxu0 0.0
    %895 = vmatprep.subr.mxu0 0.0
    %896 = vmatpush2.msra.mxu0 0.0
    %897 = vmatprep.subr.mxu0 0.0
    %898 = vmatpush2.msra.mxu0 0.0
    %899 = vmatprep.subr.mxu0 0.0
    %900 = vmatpush2.msra.mxu0 0.0
    %901 = vmatprep.subr.mxu0 0.0
    %902 = vmatpush2.msra.mxu0 0.0
    %903 = vmatprep.subr.mxu0 0.0
    %904 = vmatpush2.msra.mxu0 0.0
    %905 = vmatprep.subr.mxu0 0.0
    %906 = vmatpush2.msra.mxu0 0.0
    %907 = vmatprep.mubr.f32.mxu0 0.0
    %v908 = vand.u32 %v614, 4294901760
    %v909 = vsub.f32 %v614, %v908
    %v910 = vand.u32 %v909, 4294901760
    %911 = vmatmul.mubr.f32.gmra.mxu0 %v910
    %v912 = vpop.f32.mrf.mxu0
    %v913 = vadd.f32 %v839, %v912
    %v914 = vpop.f32.mrf.mxu0
    %915 = vdwg.mxu0
    %916 = vmatprep.subr.mxu0 0.0
    %917 = vmatpush1.msra.mxu0 0.0
    %918 = vmatprep.subr.mxu0 0.0
    %919 = vmatpush1.msra.mxu0 0.0
    %920 = vmatprep.subr.mxu0 0.0
    %921 = vmatpush1.msra.mxu0 0.0
    %922 = vmatprep.subr.mxu0 0.0
    %923 = vmatpush1.msra.mxu0 0.0
    %924 = vmatprep.subr.mxu0 0.0
    %925 = vmatpush1.msra.mxu0 0.0
    %926 = vmatprep.subr.mxu0 0.0
    %927 = vmatpush1.msra.mxu0 0.0
    %928 = vmatprep.subr.mxu0 0.0
    %929 = vmatpush1.msra.mxu0 0.0
    %930 = vmatprep.subr.mxu0 0.0
    %931 = vmatpush1.msra.mxu0 0.0
    %932 = vmatprep.subr.mxu0 0.0
    %933 = vmatpush1.msra.mxu0 0.0
    %934 = vmatprep.subr.mxu0 0.0
    %935 = vmatpush1.msra.mxu0 0.0
    %936 = vmatprep.subr.mxu0 0.0
    %937 = vmatpush1.msra.mxu0 0.0
    %938 = vmatprep.subr.mxu0 0.0
    %939 = vmatpush1.msra.mxu0 0.0
    %940 = vmatprep.subr.mxu0 0.0
    %941 = vmatpush1.msra.mxu0 0.0
    %942 = vmatprep.subr.mxu0 0.0
    %943 = vmatpush1.msra.mxu0 0.0
    %944 = vmatprep.subr.mxu0 0.0
    %945 = vmatpush1.msra.mxu0 0.0
    %946 = vmatprep.subr.mxu0 0.0
    %v947 = vand.u32 %v98, 4294901760
    %v948 = vsub.f32 %v98, %v947
    %v949 = vand.u32 %v948, 4294901760
    %950 = vmatpush1.msra.mxu0 %v949
    %951 = vmatprep.subr.mxu0 0.0
    %952 = vmatpush2.msra.mxu0 0.0
    %953 = vmatprep.subr.mxu0 0.0
    %954 = vmatpush2.msra.mxu0 0.0
    %955 = vmatprep.subr.mxu0 0.0
    %956 = vmatpush2.msra.mxu0 0.0
    %957 = vmatprep.subr.mxu0 0.0
    %958 = vmatpush2.msra.mxu0 0.0
    %959 = vmatprep.subr.mxu0 0.0
    %960 = vmatpush2.msra.mxu0 0.0
    %961 = vmatprep.subr.mxu0 0.0
    %962 = vmatpush2.msra.mxu0 0.0
    %963 = vmatprep.subr.mxu0 0.0
    %964 = vmatpush2.msra.mxu0 0.0
    %965 = vmatprep.subr.mxu0 0.0
    %966 = vmatpush2.msra.mxu0 0.0
    %967 = vmatprep.subr.mxu0 0.0
    %968 = vmatpush2.msra.mxu0 0.0
    %969 = vmatprep.subr.mxu0 0.0
    %970 = vmatpush2.msra.mxu0 0.0
    %971 = vmatprep.subr.mxu0 0.0
    %972 = vmatpush2.msra.mxu0 0.0
    %973 = vmatprep.subr.mxu0 0.0
    %974 = vmatpush2.msra.mxu0 0.0
    %975 = vmatprep.subr.mxu0 0.0
    %976 = vmatpush2.msra.mxu0 0.0
    %977 = vmatprep.subr.mxu0 0.0
    %978 = vmatpush2.msra.mxu0 0.0
    %979 = vmatprep.subr.mxu0 0.0
    %980 = vmatpush2.msra.mxu0 0.0
    %981 = vmatprep.subr.mxu0 0.0
    %982 = vmatpush2.msra.mxu0 0.0
    %983 = vmatprep.mubr.f32.mxu0 0.0
    %v984 = vand.u32 %v614, 4294901760
    %985 = vmatmul.mubr.f32.gmra.mxu0 %v984
    %v986 = vpop.f32.mrf.mxu0
    %v987 = vadd.f32 %v913, %v986
    %v988 = vpop.f32.mrf.mxu0
    %989 = vdwg.mxu0
    %990 = vmatprep.subr.mxu0 0.0
    %991 = vmatpush1.msra.mxu0 0.0
    %992 = vmatprep.subr.mxu0 0.0
    %993 = vmatpush1.msra.mxu0 0.0
    %994 = vmatprep.subr.mxu0 0.0
    %995 = vmatpush1.msra.mxu0 0.0
    %996 = vmatprep.subr.mxu0 0.0
    %997 = vmatpush1.msra.mxu0 0.0
    %998 = vmatprep.subr.mxu0 0.0
    %999 = vmatpush1.msra.mxu0 0.0
    %1000 = vmatprep.subr.mxu0 0.0
    %1001 = vmatpush1.msra.mxu0 0.0
    %1002 = vmatprep.subr.mxu0 0.0
    %1003 = vmatpush1.msra.mxu0 0.0
    %1004 = vmatprep.subr.mxu0 0.0
    %1005 = vmatpush1.msra.mxu0 0.0
    %1006 = vmatprep.subr.mxu0 0.0
    %1007 = vmatpush1.msra.mxu0 0.0
    %1008 = vmatprep.subr.mxu0 0.0
    %1009 = vmatpush1.msra.mxu0 0.0
    %1010 = vmatprep.subr.mxu0 0.0
    %1011 = vmatpush1.msra.mxu0 0.0
    %1012 = vmatprep.subr.mxu0 0.0
    %1013 = vmatpush1.msra.mxu0 0.0
    %1014 = vmatprep.subr.mxu0 0.0
    %1015 = vmatpush1.msra.mxu0 0.0
    %1016 = vmatprep.subr.mxu0 0.0
    %1017 = vmatpush1.msra.mxu0 0.0
    %1018 = vmatprep.subr.mxu0 0.0
    %1019 = vmatpush1.msra.mxu0 0.0
    %1020 = vmatprep.subr.mxu0 0.0
    %v1021 = vand.u32 %v98, 4294901760
    %1022 = vmatpush1.msra.mxu0 %v1021
    %1023 = vmatprep.subr.mxu0 0.0
    %1024 = vmatpush2.msra.mxu0 0.0
    %1025 = vmatprep.subr.mxu0 0.0
    %1026 = vmatpush2.msra.mxu0 0.0
    %1027 = vmatprep.subr.mxu0 0.0
    %1028 = vmatpush2.msra.mxu0 0.0
    %1029 = vmatprep.subr.mxu0 0.0
    %1030 = vmatpush2.msra.mxu0 0.0
    %1031 = vmatprep.subr.mxu0 0.0
    %1032 = vmatpush2.msra.mxu0 0.0
    %1033 = vmatprep.subr.mxu0 0.0
    %1034 = vmatpush2.msra.mxu0 0.0
    %1035 = vmatprep.subr.mxu0 0.0
    %1036 = vmatpush2.msra.mxu0 0.0
    %1037 = vmatprep.subr.mxu0 0.0
    %1038 = vmatpush2.msra.mxu0 0.0
    %1039 = vmatprep.subr.mxu0 0.0
    %1040 = vmatpush2.msra.mxu0 0.0
    %1041 = vmatprep.subr.mxu0 0.0
    %1042 = vmatpush2.msra.mxu0 0.0
    %1043 = vmatprep.subr.mxu0 0.0
    %1044 = vmatpush2.msra.mxu0 0.0
    %1045 = vmatprep.subr.mxu0 0.0
    %1046 = vmatpush2.msra.mxu0 0.0
    %1047 = vmatprep.subr.mxu0 0.0
    %1048 = vmatpush2.msra.mxu0 0.0
    %1049 = vmatprep.subr.mxu0 0.0
    %1050 = vmatpush2.msra.mxu0 0.0
    %1051 = vmatprep.subr.mxu0 0.0
    %1052 = vmatpush2.msra.mxu0 0.0
    %1053 = vmatprep.subr.mxu0 0.0
    %1054 = vmatpush2.msra.mxu0 0.0
    %1055 = vmatprep.mubr.f32.mxu0 0.0
    %v1056 = vand.u32 %v614, 4294901760
    %1057 = vmatmul.mubr.f32.gmra.mxu0 %v1056
    %v1058 = vpop.f32.mrf.mxu0
    %v1059 = vadd.f32 %v987, %v1058
    %v1060 = vpop.f32.mrf.mxu0
    %1061 = vdwg.mxu0
    %v1062 = vld [vmem:[#allocation10] sm:$0xff]
    %v1063 = vld [vmem:[#allocation10 + $0x8] sm:$0xff]
    %v1064 = vld [vmem:[#allocation11] sm:$0xff]
    %v1065 = vld [vmem:[#allocation11 + $0x8] sm:$0xff]
    %1066 = vxpose.xlu0.b32.start [1/16] %v1062, 128
    %1067 = vxpose.xlu0.b32.cont [2/16] 0.0, 128
    %1068 = vxpose.xlu0.b32.cont [3/16] 0.0, 128
    %1069 = vxpose.xlu0.b32.cont [4/16] 0.0, 128
    %1070 = vxpose.xlu0.b32.cont [5/16] 0.0, 128
    %1071 = vxpose.xlu0.b32.cont [6/16] 0.0, 128
    %1072 = vxpose.xlu0.b32.cont [7/16] 0.0, 128
    %1073 = vxpose.xlu0.b32.cont [8/16] 0.0, 128
    %1074 = vxpose.xlu0.b32.cont [9/16] 0.0, 128
    %1075 = vxpose.xlu0.b32.cont [10/16] 0.0, 128
    %1076 = vxpose.xlu0.b32.cont [11/16] 0.0, 128
    %1077 = vxpose.xlu0.b32.cont [12/16] 0.0, 128
    %1078 = vxpose.xlu0.b32.cont [13/16] 0.0, 128
    %1079 = vxpose.xlu0.b32.cont [14/16] 0.0, 128
    %1080 = vxpose.xlu0.b32.cont [15/16] 0.0, 128
    %1081 = vxpose.xlu0.b32.end [16/16] 0.0, 128
    %v1082 = vpop.trf.xlu0
    %v1083 = vpop.trf.xlu0
    %v1084 = vpop.trf.xlu0
    %v1085 = vpop.trf.xlu0
    %v1086 = vpop.trf.xlu0
    %v1087 = vpop.trf.xlu0
    %v1088 = vpop.trf.xlu0
    %v1089 = vpop.trf.xlu0
    %v1090 = vpop.trf.xlu0
    %v1091 = vpop.trf.xlu0
    %v1092 = vpop.trf.xlu0
    %v1093 = vpop.trf.xlu0
    %v1094 = vpop.trf.xlu0
    %v1095 = vpop.trf.xlu0
    %v1096 = vpop.trf.xlu0
    %v1097 = vpop.trf.xlu0
    %v1099 = vsel %vm131, %v1082, 0
    %1101 = vmatprep.subr.mxu0 0.0
    %1102 = vmatpush1.msra.mxu0 0.0
    %1103 = vmatprep.subr.mxu0 0.0
    %1104 = vmatpush1.msra.mxu0 0.0
    %1105 = vmatprep.subr.mxu0 0.0
    %1106 = vmatpush1.msra.mxu0 0.0
    %1107 = vmatprep.subr.mxu0 0.0
    %1108 = vmatpush1.msra.mxu0 0.0
    %1109 = vmatprep.subr.mxu0 0.0
    %1110 = vmatpush1.msra.mxu0 0.0
    %1111 = vmatprep.subr.mxu0 0.0
    %1112 = vmatpush1.msra.mxu0 0.0
    %1113 = vmatprep.subr.mxu0 0.0
    %1114 = vmatpush1.msra.mxu0 0.0
    %1115 = vmatprep.subr.mxu0 0.0
    %1116 = vmatpush1.msra.mxu0 0.0
    %1117 = vmatprep.subr.mxu0 0.0
    %1118 = vmatpush1.msra.mxu0 0.0
    %1119 = vmatprep.subr.mxu0 0.0
    %1120 = vmatpush1.msra.mxu0 0.0
    %1121 = vmatprep.subr.mxu0 0.0
    %1122 = vmatpush1.msra.mxu0 0.0
    %1123 = vmatprep.subr.mxu0 0.0
    %1124 = vmatpush1.msra.mxu0 0.0
    %1125 = vmatprep.subr.mxu0 0.0
    %1126 = vmatpush1.msra.mxu0 0.0
    %1127 = vmatprep.subr.mxu0 0.0
    %1128 = vmatpush1.msra.mxu0 0.0
    %1129 = vmatprep.subr.mxu0 0.0
    %1130 = vmatpush1.msra.mxu0 0.0
    %1131 = vmatprep.subr.mxu0 0.0
    %v1132 = vand.u32 %v1064, 4294901760
    %1133 = vmatpush1.msra.mxu0 %v1132
    %1134 = vmatprep.subr.mxu0 0.0
    %1135 = vmatpush2.msra.mxu0 0.0
    %1136 = vmatprep.subr.mxu0 0.0
    %1137 = vmatpush2.msra.mxu0 0.0
    %1138 = vmatprep.subr.mxu0 0.0
    %1139 = vmatpush2.msra.mxu0 0.0
    %1140 = vmatprep.subr.mxu0 0.0
    %1141 = vmatpush2.msra.mxu0 0.0
    %1142 = vmatprep.subr.mxu0 0.0
    %1143 = vmatpush2.msra.mxu0 0.0
    %1144 = vmatprep.subr.mxu0 0.0
    %1145 = vmatpush2.msra.mxu0 0.0
    %1146 = vmatprep.subr.mxu0 0.0
    %1147 = vmatpush2.msra.mxu0 0.0
    %1148 = vmatprep.subr.mxu0 0.0
    %1149 = vmatpush2.msra.mxu0 0.0
    %1150 = vmatprep.subr.mxu0 0.0
    %1151 = vmatpush2.msra.mxu0 0.0
    %1152 = vmatprep.subr.mxu0 0.0
    %1153 = vmatpush2.msra.mxu0 0.0
    %1154 = vmatprep.subr.mxu0 0.0
    %1155 = vmatpush2.msra.mxu0 0.0
    %1156 = vmatprep.subr.mxu0 0.0
    %1157 = vmatpush2.msra.mxu0 0.0
    %1158 = vmatprep.subr.mxu0 0.0
    %1159 = vmatpush2.msra.mxu0 0.0
    %1160 = vmatprep.subr.mxu0 0.0
    %1161 = vmatpush2.msra.mxu0 0.0
    %1162 = vmatprep.subr.mxu0 0.0
    %1163 = vmatpush2.msra.mxu0 0.0
    %1164 = vmatprep.subr.mxu0 0.0
    %1165 = vmatpush2.msra.mxu0 0.0
    %1166 = vmatprep.mubr.f32.mxu0 0.0
    %v1167 = vand.u32 %v1099, 4294901760
    %v1168 = vsub.f32 %v1099, %v1167
    %v1169 = vand.u32 %v1168, 4294901760
    %v1170 = vsub.f32 %v1168, %v1169
    %v1171 = vand.u32 %v1170, 4294901760
    %1172 = vmatmul.mubr.f32.gmra.mxu0 %v1171
    %v1173 = vpop.f32.mrf.mxu0
    %v1174 = vadd.f32 0.0, %v1173
    %v1175 = vpop.f32.mrf.mxu0
    %1176 = vdwg.mxu0
    %1177 = vmatprep.subr.mxu0 0.0
    %1178 = vmatpush1.msra.mxu0 0.0
    %1179 = vmatprep.subr.mxu0 0.0
    %1180 = vmatpush1.msra.mxu0 0.0
    %1181 = vmatprep.subr.mxu0 0.0
    %1182 = vmatpush1.msra.mxu0 0.0
    %1183 = vmatprep.subr.mxu0 0.0
    %1184 = vmatpush1.msra.mxu0 0.0
    %1185 = vmatprep.subr.mxu0 0.0
    %1186 = vmatpush1.msra.mxu0 0.0
    %1187 = vmatprep.subr.mxu0 0.0
    %1188 = vmatpush1.msra.mxu0 0.0
    %1189 = vmatprep.subr.mxu0 0.0
    %1190 = vmatpush1.msra.mxu0 0.0
    %1191 = vmatprep.subr.mxu0 0.0
    %1192 = vmatpush1.msra.mxu0 0.0
    %1193 = vmatprep.subr.mxu0 0.0
    %1194 = vmatpush1.msra.mxu0 0.0
    %1195 = vmatprep.subr.mxu0 0.0
    %1196 = vmatpush1.msra.mxu0 0.0
    %1197 = vmatprep.subr.mxu0 0.0
    %1198 = vmatpush1.msra.mxu0 0.0
    %1199 = vmatprep.subr.mxu0 0.0
    %1200 = vmatpush1.msra.mxu0 0.0
    %1201 = vmatprep.subr.mxu0 0.0
    %1202 = vmatpush1.msra.mxu0 0.0
    %1203 = vmatprep.subr.mxu0 0.0
    %1204 = vmatpush1.msra.mxu0 0.0
    %1205 = vmatprep.subr.mxu0 0.0
    %1206 = vmatpush1.msra.mxu0 0.0
    %1207 = vmatprep.subr.mxu0 0.0
    %v1208 = vand.u32 %v1064, 4294901760
    %v1209 = vsub.f32 %v1064, %v1208
    %v1210 = vand.u32 %v1209, 4294901760
    %v1211 = vsub.f32 %v1209, %v1210
    %v1212 = vand.u32 %v1211, 4294901760
    %1213 = vmatpush1.msra.mxu0 %v1212
    %1214 = vmatprep.subr.mxu0 0.0
    %1215 = vmatpush2.msra.mxu0 0.0
    %1216 = vmatprep.subr.mxu0 0.0
    %1217 = vmatpush2.msra.mxu0 0.0
    %1218 = vmatprep.subr.mxu0 0.0
    %1219 = vmatpush2.msra.mxu0 0.0
    %1220 = vmatprep.subr.mxu0 0.0
    %1221 = vmatpush2.msra.mxu0 0.0
    %1222 = vmatprep.subr.mxu0 0.0
    %1223 = vmatpush2.msra.mxu0 0.0
    %1224 = vmatprep.subr.mxu0 0.0
    %1225 = vmatpush2.msra.mxu0 0.0
    %1226 = vmatprep.subr.mxu0 0.0
    %1227 = vmatpush2.msra.mxu0 0.0
    %1228 = vmatprep.subr.mxu0 0.0
    %1229 = vmatpush2.msra.mxu0 0.0
    %1230 = vmatprep.subr.mxu0 0.0
    %1231 = vmatpush2.msra.mxu0 0.0
    %1232 = vmatprep.subr.mxu0 0.0
    %1233 = vmatpush2.msra.mxu0 0.0
    %1234 = vmatprep.subr.mxu0 0.0
    %1235 = vmatpush2.msra.mxu0 0.0
    %1236 = vmatprep.subr.mxu0 0.0
    %1237 = vmatpush2.msra.mxu0 0.0
    %1238 = vmatprep.subr.mxu0 0.0
    %1239 = vmatpush2.msra.mxu0 0.0
    %1240 = vmatprep.subr.mxu0 0.0
    %1241 = vmatpush2.msra.mxu0 0.0
    %1242 = vmatprep.subr.mxu0 0.0
    %1243 = vmatpush2.msra.mxu0 0.0
    %1244 = vmatprep.subr.mxu0 0.0
    %1245 = vmatpush2.msra.mxu0 0.0
    %1246 = vmatprep.mubr.f32.mxu0 0.0
    %v1247 = vand.u32 %v1099, 4294901760
    %1248 = vmatmul.mubr.f32.gmra.mxu0 %v1247
    %v1249 = vpop.f32.mrf.mxu0
    %v1250 = vadd.f32 %v1174, %v1249
    %v1251 = vpop.f32.mrf.mxu0
    %1252 = vdwg.mxu0
    %1253 = vmatprep.subr.mxu0 0.0
    %1254 = vmatpush1.msra.mxu0 0.0
    %1255 = vmatprep.subr.mxu0 0.0
    %1256 = vmatpush1.msra.mxu0 0.0
    %1257 = vmatprep.subr.mxu0 0.0
    %1258 = vmatpush1.msra.mxu0 0.0
    %1259 = vmatprep.subr.mxu0 0.0
    %1260 = vmatpush1.msra.mxu0 0.0
    %1261 = vmatprep.subr.mxu0 0.0
    %1262 = vmatpush1.msra.mxu0 0.0
    %1263 = vmatprep.subr.mxu0 0.0
    %1264 = vmatpush1.msra.mxu0 0.0
    %1265 = vmatprep.subr.mxu0 0.0
    %1266 = vmatpush1.msra.mxu0 0.0
    %1267 = vmatprep.subr.mxu0 0.0
    %1268 = vmatpush1.msra.mxu0 0.0
    %1269 = vmatprep.subr.mxu0 0.0
    %1270 = vmatpush1.msra.mxu0 0.0
    %1271 = vmatprep.subr.mxu0 0.0
    %1272 = vmatpush1.msra.mxu0 0.0
    %1273 = vmatprep.subr.mxu0 0.0
    %1274 = vmatpush1.msra.mxu0 0.0
    %1275 = vmatprep.subr.mxu0 0.0
    %1276 = vmatpush1.msra.mxu0 0.0
    %1277 = vmatprep.subr.mxu0 0.0
    %1278 = vmatpush1.msra.mxu0 0.0
    %1279 = vmatprep.subr.mxu0 0.0
    %1280 = vmatpush1.msra.mxu0 0.0
    %1281 = vmatprep.subr.mxu0 0.0
    %1282 = vmatpush1.msra.mxu0 0.0
    %1283 = vmatprep.subr.mxu0 0.0
    %v1284 = vand.u32 %v1064, 4294901760
    %v1285 = vsub.f32 %v1064, %v1284
    %1286 = vmatpush1.msra.mxu0 %v1285
    %1287 = vmatprep.subr.mxu0 0.0
    %1288 = vmatpush2.msra.mxu0 0.0
    %1289 = vmatprep.subr.mxu0 0.0
    %1290 = vmatpush2.msra.mxu0 0.0
    %1291 = vmatprep.subr.mxu0 0.0
    %1292 = vmatpush2.msra.mxu0 0.0
    %1293 = vmatprep.subr.mxu0 0.0
    %1294 = vmatpush2.msra.mxu0 0.0
    %1295 = vmatprep.subr.mxu0 0.0
    %1296 = vmatpush2.msra.mxu0 0.0
    %1297 = vmatprep.subr.mxu0 0.0
    %1298 = vmatpush2.msra.mxu0 0.0
    %1299 = vmatprep.subr.mxu0 0.0
    %1300 = vmatpush2.msra.mxu0 0.0
    %1301 = vmatprep.subr.mxu0 0.0
    %1302 = vmatpush2.msra.mxu0 0.0
    %1303 = vmatprep.subr.mxu0 0.0
    %1304 = vmatpush2.msra.mxu0 0.0
    %1305 = vmatprep.subr.mxu0 0.0
    %1306 = vmatpush2.msra.mxu0 0.0
    %1307 = vmatprep.subr.mxu0 0.0
    %1308 = vmatpush2.msra.mxu0 0.0
    %1309 = vmatprep.subr.mxu0 0.0
    %1310 = vmatpush2.msra.mxu0 0.0
    %1311 = vmatprep.subr.mxu0 0.0
    %1312 = vmatpush2.msra.mxu0 0.0
    %1313 = vmatprep.subr.mxu0 0.0
    %1314 = vmatpush2.msra.mxu0 0.0
    %1315 = vmatprep.subr.mxu0 0.0
    %1316 = vmatpush2.msra.mxu0 0.0
    %1317 = vmatprep.subr.mxu0 0.0
    %1318 = vmatpush2.msra.mxu0 0.0
    %1319 = vmatprep.mubr.f32.mxu0 0.0
    %v1320 = vand.u32 %v1099, 4294901760
    %v1321 = vsub.f32 %v1099, %v1320
    %1322 = vmatmul.mubr.f32.gmra.mxu0 %v1321
    %v1323 = vpop.f32.mrf.mxu0
    %v1324 = vadd.f32 %v1250, %v1323
    %v1325 = vpop.f32.mrf.mxu0
    %1326 = vdwg.mxu0
    %1327 = vmatprep.subr.mxu0 0.0
    %1328 = vmatpush1.msra.mxu0 0.0
    %1329 = vmatprep.subr.mxu0 0.0
    %1330 = vmatpush1.msra.mxu0 0.0
    %1331 = vmatprep.subr.mxu0 0.0
    %1332 = vmatpush1.msra.mxu0 0.0
    %1333 = vmatprep.subr.mxu0 0.0
    %1334 = vmatpush1.msra.mxu0 0.0
    %1335 = vmatprep.subr.mxu0 0.0
    %1336 = vmatpush1.msra.mxu0 0.0
    %1337 = vmatprep.subr.mxu0 0.0
    %1338 = vmatpush1.msra.mxu0 0.0
    %1339 = vmatprep.subr.mxu0 0.0
    %1340 = vmatpush1.msra.mxu0 0.0
    %1341 = vmatprep.subr.mxu0 0.0
    %1342 = vmatpush1.msra.mxu0 0.0
    %1343 = vmatprep.subr.mxu0 0.0
    %1344 = vmatpush1.msra.mxu0 0.0
    %1345 = vmatprep.subr.mxu0 0.0
    %1346 = vmatpush1.msra.mxu0 0.0
    %1347 = vmatprep.subr.mxu0 0.0
    %1348 = vmatpush1.msra.mxu0 0.0
    %1349 = vmatprep.subr.mxu0 0.0
    %1350 = vmatpush1.msra.mxu0 0.0
    %1351 = vmatprep.subr.mxu0 0.0
    %1352 = vmatpush1.msra.mxu0 0.0
    %1353 = vmatprep.subr.mxu0 0.0
    %1354 = vmatpush1.msra.mxu0 0.0
    %1355 = vmatprep.subr.mxu0 0.0
    %1356 = vmatpush1.msra.mxu0 0.0
    %1357 = vmatprep.subr.mxu0 0.0
    %v1358 = vand.u32 %v1064, 4294901760
    %1359 = vmatpush1.msra.mxu0 %v1358
    %1360 = vmatprep.subr.mxu0 0.0
    %1361 = vmatpush2.msra.mxu0 0.0
    %1362 = vmatprep.subr.mxu0 0.0
    %1363 = vmatpush2.msra.mxu0 0.0
    %1364 = vmatprep.subr.mxu0 0.0
    %1365 = vmatpush2.msra.mxu0 0.0
    %1366 = vmatprep.subr.mxu0 0.0
    %1367 = vmatpush2.msra.mxu0 0.0
    %1368 = vmatprep.subr.mxu0 0.0
    %1369 = vmatpush2.msra.mxu0 0.0
    %1370 = vmatprep.subr.mxu0 0.0
    %1371 = vmatpush2.msra.mxu0 0.0
    %1372 = vmatprep.subr.mxu0 0.0
    %1373 = vmatpush2.msra.mxu0 0.0
    %1374 = vmatprep.subr.mxu0 0.0
    %1375 = vmatpush2.msra.mxu0 0.0
    %1376 = vmatprep.subr.mxu0 0.0
    %1377 = vmatpush2.msra.mxu0 0.0
    %1378 = vmatprep.subr.mxu0 0.0
    %1379 = vmatpush2.msra.mxu0 0.0
    %1380 = vmatprep.subr.mxu0 0.0
    %1381 = vmatpush2.msra.mxu0 0.0
    %1382 = vmatprep.subr.mxu0 0.0
    %1383 = vmatpush2.msra.mxu0 0.0
    %1384 = vmatprep.subr.mxu0 0.0
    %1385 = vmatpush2.msra.mxu0 0.0
    %1386 = vmatprep.subr.mxu0 0.0
    %1387 = vmatpush2.msra.mxu0 0.0
    %1388 = vmatprep.subr.mxu0 0.0
    %1389 = vmatpush2.msra.mxu0 0.0
    %1390 = vmatprep.subr.mxu0 0.0
    %1391 = vmatpush2.msra.mxu0 0.0
    %1392 = vmatprep.mubr.f32.mxu0 0.0
    %v1393 = vand.u32 %v1099, 4294901760
    %v1394 = vsub.f32 %v1099, %v1393
    %v1395 = vand.u32 %v1394, 4294901760
    %1396 = vmatmul.mubr.f32.gmra.mxu0 %v1395
    %v1397 = vpop.f32.mrf.mxu0
    %v1398 = vadd.f32 %v1324, %v1397
    %v1399 = vpop.f32.mrf.mxu0
    %1400 = vdwg.mxu0
    %1401 = vmatprep.subr.mxu0 0.0
    %1402 = vmatpush1.msra.mxu0 0.0
    %1403 = vmatprep.subr.mxu0 0.0
    %1404 = vmatpush1.msra.mxu0 0.0
    %1405 = vmatprep.subr.mxu0 0.0
    %1406 = vmatpush1.msra.mxu0 0.0
    %1407 = vmatprep.subr.mxu0 0.0
    %1408 = vmatpush1.msra.mxu0 0.0
    %1409 = vmatprep.subr.mxu0 0.0
    %1410 = vmatpush1.msra.mxu0 0.0
    %1411 = vmatprep.subr.mxu0 0.0
    %1412 = vmatpush1.msra.mxu0 0.0
    %1413 = vmatprep.subr.mxu0 0.0
    %1414 = vmatpush1.msra.mxu0 0.0
    %1415 = vmatprep.subr.mxu0 0.0
    %1416 = vmatpush1.msra.mxu0 0.0
    %1417 = vmatprep.subr.mxu0 0.0
    %1418 = vmatpush1.msra.mxu0 0.0
    %1419 = vmatprep.subr.mxu0 0.0
    %1420 = vmatpush1.msra.mxu0 0.0
    %1421 = vmatprep.subr.mxu0 0.0
    %1422 = vmatpush1.msra.mxu0 0.0
    %1423 = vmatprep.subr.mxu0 0.0
    %1424 = vmatpush1.msra.mxu0 0.0
    %1425 = vmatprep.subr.mxu0 0.0
    %1426 = vmatpush1.msra.mxu0 0.0
    %1427 = vmatprep.subr.mxu0 0.0
    %1428 = vmatpush1.msra.mxu0 0.0
    %1429 = vmatprep.subr.mxu0 0.0
    %1430 = vmatpush1.msra.mxu0 0.0
    %1431 = vmatprep.subr.mxu0 0.0
    %v1432 = vand.u32 %v1064, 4294901760
    %v1433 = vsub.f32 %v1064, %v1432
    %v1434 = vand.u32 %v1433, 4294901760
    %1435 = vmatpush1.msra.mxu0 %v1434
    %1436 = vmatprep.subr.mxu0 0.0
    %1437 = vmatpush2.msra.mxu0 0.0
    %1438 = vmatprep.subr.mxu0 0.0
    %1439 = vmatpush2.msra.mxu0 0.0
    %1440 = vmatprep.subr.mxu0 0.0
    %1441 = vmatpush2.msra.mxu0 0.0
    %1442 = vmatprep.subr.mxu0 0.0
    %1443 = vmatpush2.msra.mxu0 0.0
    %1444 = vmatprep.subr.mxu0 0.0
    %1445 = vmatpush2.msra.mxu0 0.0
    %1446 = vmatprep.subr.mxu0 0.0
    %1447 = vmatpush2.msra.mxu0 0.0
    %1448 = vmatprep.subr.mxu0 0.0
    %1449 = vmatpush2.msra.mxu0 0.0
    %1450 = vmatprep.subr.mxu0 0.0
    %1451 = vmatpush2.msra.mxu0 0.0
    %1452 = vmatprep.subr.mxu0 0.0
    %1453 = vmatpush2.msra.mxu0 0.0
    %1454 = vmatprep.subr.mxu0 0.0
    %1455 = vmatpush2.msra.mxu0 0.0
    %1456 = vmatprep.subr.mxu0 0.0
    %1457 = vmatpush2.msra.mxu0 0.0
    %1458 = vmatprep.subr.mxu0 0.0
    %1459 = vmatpush2.msra.mxu0 0.0
    %1460 = vmatprep.subr.mxu0 0.0
    %1461 = vmatpush2.msra.mxu0 0.0
    %1462 = vmatprep.subr.mxu0 0.0
    %1463 = vmatpush2.msra.mxu0 0.0
    %1464 = vmatprep.subr.mxu0 0.0
    %1465 = vmatpush2.msra.mxu0 0.0
    %1466 = vmatprep.subr.mxu0 0.0
    %1467 = vmatpush2.msra.mxu0 0.0
    %1468 = vmatprep.mubr.f32.mxu0 0.0
    %v1469 = vand.u32 %v1099, 4294901760
    %1470 = vmatmul.mubr.f32.gmra.mxu0 %v1469
    %v1471 = vpop.f32.mrf.mxu0
    %v1472 = vadd.f32 %v1398, %v1471
    %v1473 = vpop.f32.mrf.mxu0
    %1474 = vdwg.mxu0
    %1475 = vmatprep.subr.mxu0 0.0
    %1476 = vmatpush1.msra.mxu0 0.0
    %1477 = vmatprep.subr.mxu0 0.0
    %1478 = vmatpush1.msra.mxu0 0.0
    %1479 = vmatprep.subr.mxu0 0.0
    %1480 = vmatpush1.msra.mxu0 0.0
    %1481 = vmatprep.subr.mxu0 0.0
    %1482 = vmatpush1.msra.mxu0 0.0
    %1483 = vmatprep.subr.mxu0 0.0
    %1484 = vmatpush1.msra.mxu0 0.0
    %1485 = vmatprep.subr.mxu0 0.0
    %1486 = vmatpush1.msra.mxu0 0.0
    %1487 = vmatprep.subr.mxu0 0.0
    %1488 = vmatpush1.msra.mxu0 0.0
    %1489 = vmatprep.subr.mxu0 0.0
    %1490 = vmatpush1.msra.mxu0 0.0
    %1491 = vmatprep.subr.mxu0 0.0
    %1492 = vmatpush1.msra.mxu0 0.0
    %1493 = vmatprep.subr.mxu0 0.0
    %1494 = vmatpush1.msra.mxu0 0.0
    %1495 = vmatprep.subr.mxu0 0.0
    %1496 = vmatpush1.msra.mxu0 0.0
    %1497 = vmatprep.subr.mxu0 0.0
    %1498 = vmatpush1.msra.mxu0 0.0
    %1499 = vmatprep.subr.mxu0 0.0
    %1500 = vmatpush1.msra.mxu0 0.0
    %1501 = vmatprep.subr.mxu0 0.0
    %1502 = vmatpush1.msra.mxu0 0.0
    %1503 = vmatprep.subr.mxu0 0.0
    %1504 = vmatpush1.msra.mxu0 0.0
    %1505 = vmatprep.subr.mxu0 0.0
    %v1506 = vand.u32 %v1064, 4294901760
    %1507 = vmatpush1.msra.mxu0 %v1506
    %1508 = vmatprep.subr.mxu0 0.0
    %1509 = vmatpush2.msra.mxu0 0.0
    %1510 = vmatprep.subr.mxu0 0.0
    %1511 = vmatpush2.msra.mxu0 0.0
    %1512 = vmatprep.subr.mxu0 0.0
    %1513 = vmatpush2.msra.mxu0 0.0
    %1514 = vmatprep.subr.mxu0 0.0
    %1515 = vmatpush2.msra.mxu0 0.0
    %1516 = vmatprep.subr.mxu0 0.0
    %1517 = vmatpush2.msra.mxu0 0.0
    %1518 = vmatprep.subr.mxu0 0.0
    %1519 = vmatpush2.msra.mxu0 0.0
    %1520 = vmatprep.subr.mxu0 0.0
    %1521 = vmatpush2.msra.mxu0 0.0
    %1522 = vmatprep.subr.mxu0 0.0
    %1523 = vmatpush2.msra.mxu0 0.0
    %1524 = vmatprep.subr.mxu0 0.0
    %1525 = vmatpush2.msra.mxu0 0.0
    %1526 = vmatprep.subr.mxu0 0.0
    %1527 = vmatpush2.msra.mxu0 0.0
    %1528 = vmatprep.subr.mxu0 0.0
    %1529 = vmatpush2.msra.mxu0 0.0
    %1530 = vmatprep.subr.mxu0 0.0
    %1531 = vmatpush2.msra.mxu0 0.0
    %1532 = vmatprep.subr.mxu0 0.0
    %1533 = vmatpush2.msra.mxu0 0.0
    %1534 = vmatprep.subr.mxu0 0.0
    %1535 = vmatpush2.msra.mxu0 0.0
    %1536 = vmatprep.subr.mxu0 0.0
    %1537 = vmatpush2.msra.mxu0 0.0
    %1538 = vmatprep.subr.mxu0 0.0
    %1539 = vmatpush2.msra.mxu0 0.0
    %1540 = vmatprep.mubr.f32.mxu0 0.0
    %v1541 = vand.u32 %v1099, 4294901760
    %1542 = vmatmul.mubr.f32.gmra.mxu0 %v1541
    %v1543 = vpop.f32.mrf.mxu0
    %v1544 = vadd.f32 %v1472, %v1543
    %v1545 = vpop.f32.mrf.mxu0
    %1546 = vdwg.mxu0
    %1547 = vxpose.xlu0.b32.start [1/16] %v1063, 128
    %1548 = vxpose.xlu0.b32.cont [2/16] 0.0, 128
    %1549 = vxpose.xlu0.b32.cont [3/16] 0.0, 128
    %1550 = vxpose.xlu0.b32.cont [4/16] 0.0, 128
    %1551 = vxpose.xlu0.b32.cont [5/16] 0.0, 128
    %1552 = vxpose.xlu0.b32.cont [6/16] 0.0, 128
    %1553 = vxpose.xlu0.b32.cont [7/16] 0.0, 128
    %1554 = vxpose.xlu0.b32.cont [8/16] 0.0, 128
    %1555 = vxpose.xlu0.b32.cont [9/16] 0.0, 128
    %1556 = vxpose.xlu0.b32.cont [10/16] 0.0, 128
    %1557 = vxpose.xlu0.b32.cont [11/16] 0.0, 128
    %1558 = vxpose.xlu0.b32.cont [12/16] 0.0, 128
    %1559 = vxpose.xlu0.b32.cont [13/16] 0.0, 128
    %1560 = vxpose.xlu0.b32.cont [14/16] 0.0, 128
    %1561 = vxpose.xlu0.b32.cont [15/16] 0.0, 128
    %1562 = vxpose.xlu0.b32.end [16/16] 0.0, 128
    %v1563 = vpop.trf.xlu0
    %v1564 = vpop.trf.xlu0
    %v1565 = vpop.trf.xlu0
    %v1566 = vpop.trf.xlu0
    %v1567 = vpop.trf.xlu0
    %v1568 = vpop.trf.xlu0
    %v1569 = vpop.trf.xlu0
    %v1570 = vpop.trf.xlu0
    %v1571 = vpop.trf.xlu0
    %v1572 = vpop.trf.xlu0
    %v1573 = vpop.trf.xlu0
    %v1574 = vpop.trf.xlu0
    %v1575 = vpop.trf.xlu0
    %v1576 = vpop.trf.xlu0
    %v1577 = vpop.trf.xlu0
    %v1578 = vpop.trf.xlu0
    %v1580 = vsel %vm131, %v1563, 0
    %1582 = vmatprep.subr.mxu0 0.0
    %1583 = vmatpush1.msra.mxu0 0.0
    %1584 = vmatprep.subr.mxu0 0.0
    %1585 = vmatpush1.msra.mxu0 0.0
    %1586 = vmatprep.subr.mxu0 0.0
    %1587 = vmatpush1.msra.mxu0 0.0
    %1588 = vmatprep.subr.mxu0 0.0
    %1589 = vmatpush1.msra.mxu0 0.0
    %1590 = vmatprep.subr.mxu0 0.0
    %1591 = vmatpush1.msra.mxu0 0.0
    %1592 = vmatprep.subr.mxu0 0.0
    %1593 = vmatpush1.msra.mxu0 0.0
    %1594 = vmatprep.subr.mxu0 0.0
    %1595 = vmatpush1.msra.mxu0 0.0
    %1596 = vmatprep.subr.mxu0 0.0
    %1597 = vmatpush1.msra.mxu0 0.0
    %1598 = vmatprep.subr.mxu0 0.0
    %1599 = vmatpush1.msra.mxu0 0.0
    %1600 = vmatprep.subr.mxu0 0.0
    %1601 = vmatpush1.msra.mxu0 0.0
    %1602 = vmatprep.subr.mxu0 0.0
    %1603 = vmatpush1.msra.mxu0 0.0
    %1604 = vmatprep.subr.mxu0 0.0
    %1605 = vmatpush1.msra.mxu0 0.0
    %1606 = vmatprep.subr.mxu0 0.0
    %1607 = vmatpush1.msra.mxu0 0.0
    %1608 = vmatprep.subr.mxu0 0.0
    %1609 = vmatpush1.msra.mxu0 0.0
    %1610 = vmatprep.subr.mxu0 0.0
    %1611 = vmatpush1.msra.mxu0 0.0
    %1612 = vmatprep.subr.mxu0 0.0
    %v1613 = vand.u32 %v1065, 4294901760
    %1614 = vmatpush1.msra.mxu0 %v1613
    %1615 = vmatprep.subr.mxu0 0.0
    %1616 = vmatpush2.msra.mxu0 0.0
    %1617 = vmatprep.subr.mxu0 0.0
    %1618 = vmatpush2.msra.mxu0 0.0
    %1619 = vmatprep.subr.mxu0 0.0
    %1620 = vmatpush2.msra.mxu0 0.0
    %1621 = vmatprep.subr.mxu0 0.0
    %1622 = vmatpush2.msra.mxu0 0.0
    %1623 = vmatprep.subr.mxu0 0.0
    %1624 = vmatpush2.msra.mxu0 0.0
    %1625 = vmatprep.subr.mxu0 0.0
    %1626 = vmatpush2.msra.mxu0 0.0
    %1627 = vmatprep.subr.mxu0 0.0
    %1628 = vmatpush2.msra.mxu0 0.0
    %1629 = vmatprep.subr.mxu0 0.0
    %1630 = vmatpush2.msra.mxu0 0.0
    %1631 = vmatprep.subr.mxu0 0.0
    %1632 = vmatpush2.msra.mxu0 0.0
    %1633 = vmatprep.subr.mxu0 0.0
    %1634 = vmatpush2.msra.mxu0 0.0
    %1635 = vmatprep.subr.mxu0 0.0
    %1636 = vmatpush2.msra.mxu0 0.0
    %1637 = vmatprep.subr.mxu0 0.0
    %1638 = vmatpush2.msra.mxu0 0.0
    %1639 = vmatprep.subr.mxu0 0.0
    %1640 = vmatpush2.msra.mxu0 0.0
    %1641 = vmatprep.subr.mxu0 0.0
    %1642 = vmatpush2.msra.mxu0 0.0
    %1643 = vmatprep.subr.mxu0 0.0
    %1644 = vmatpush2.msra.mxu0 0.0
    %1645 = vmatprep.subr.mxu0 0.0
    %1646 = vmatpush2.msra.mxu0 0.0
    %1647 = vmatprep.mubr.f32.mxu0 0.0
    %v1648 = vand.u32 %v1580, 4294901760
    %v1649 = vsub.f32 %v1580, %v1648
    %v1650 = vand.u32 %v1649, 4294901760
    %v1651 = vsub.f32 %v1649, %v1650
    %v1652 = vand.u32 %v1651, 4294901760
    %1653 = vmatmul.mubr.f32.gmra.mxu0 %v1652
    %v1654 = vpop.f32.mrf.mxu0
    %v1655 = vadd.f32 0.0, %v1654
    %v1656 = vpop.f32.mrf.mxu0
    %1657 = vdwg.mxu0
    %1658 = vmatprep.subr.mxu0 0.0
    %1659 = vmatpush1.msra.mxu0 0.0
    %1660 = vmatprep.subr.mxu0 0.0
    %1661 = vmatpush1.msra.mxu0 0.0
    %1662 = vmatprep.subr.mxu0 0.0
    %1663 = vmatpush1.msra.mxu0 0.0
    %1664 = vmatprep.subr.mxu0 0.0
    %1665 = vmatpush1.msra.mxu0 0.0
    %1666 = vmatprep.subr.mxu0 0.0
    %1667 = vmatpush1.msra.mxu0 0.0
    %1668 = vmatprep.subr.mxu0 0.0
    %1669 = vmatpush1.msra.mxu0 0.0
    %1670 = vmatprep.subr.mxu0 0.0
    %1671 = vmatpush1.msra.mxu0 0.0
    %1672 = vmatprep.subr.mxu0 0.0
    %1673 = vmatpush1.msra.mxu0 0.0
    %1674 = vmatprep.subr.mxu0 0.0
    %1675 = vmatpush1.msra.mxu0 0.0
    %1676 = vmatprep.subr.mxu0 0.0
    %1677 = vmatpush1.msra.mxu0 0.0
    %1678 = vmatprep.subr.mxu0 0.0
    %1679 = vmatpush1.msra.mxu0 0.0
    %1680 = vmatprep.subr.mxu0 0.0
    %1681 = vmatpush1.msra.mxu0 0.0
    %1682 = vmatprep.subr.mxu0 0.0
    %1683 = vmatpush1.msra.mxu0 0.0
    %1684 = vmatprep.subr.mxu0 0.0
    %1685 = vmatpush1.msra.mxu0 0.0
    %1686 = vmatprep.subr.mxu0 0.0
    %1687 = vmatpush1.msra.mxu0 0.0
    %1688 = vmatprep.subr.mxu0 0.0
    %v1689 = vand.u32 %v1065, 4294901760
    %v1690 = vsub.f32 %v1065, %v1689
    %v1691 = vand.u32 %v1690, 4294901760
    %v1692 = vsub.f32 %v1690, %v1691
    %v1693 = vand.u32 %v1692, 4294901760
    %1694 = vmatpush1.msra.mxu0 %v1693
    %1695 = vmatprep.subr.mxu0 0.0
    %1696 = vmatpush2.msra.mxu0 0.0
    %1697 = vmatprep.subr.mxu0 0.0
    %1698 = vmatpush2.msra.mxu0 0.0
    %1699 = vmatprep.subr.mxu0 0.0
    %1700 = vmatpush2.msra.mxu0 0.0
    %1701 = vmatprep.subr.mxu0 0.0
    %1702 = vmatpush2.msra.mxu0 0.0
    %1703 = vmatprep.subr.mxu0 0.0
    %1704 = vmatpush2.msra.mxu0 0.0
    %1705 = vmatprep.subr.mxu0 0.0
    %1706 = vmatpush2.msra.mxu0 0.0
    %1707 = vmatprep.subr.mxu0 0.0
    %1708 = vmatpush2.msra.mxu0 0.0
    %1709 = vmatprep.subr.mxu0 0.0
    %1710 = vmatpush2.msra.mxu0 0.0
    %1711 = vmatprep.subr.mxu0 0.0
    %1712 = vmatpush2.msra.mxu0 0.0
    %1713 = vmatprep.subr.mxu0 0.0
    %1714 = vmatpush2.msra.mxu0 0.0
    %1715 = vmatprep.subr.mxu0 0.0
    %1716 = vmatpush2.msra.mxu0 0.0
    %1717 = vmatprep.subr.mxu0 0.0
    %1718 = vmatpush2.msra.mxu0 0.0
    %1719 = vmatprep.subr.mxu0 0.0
    %1720 = vmatpush2.msra.mxu0 0.0
    %1721 = vmatprep.subr.mxu0 0.0
    %1722 = vmatpush2.msra.mxu0 0.0
    %1723 = vmatprep.subr.mxu0 0.0
    %1724 = vmatpush2.msra.mxu0 0.0
    %1725 = vmatprep.subr.mxu0 0.0
    %1726 = vmatpush2.msra.mxu0 0.0
    %1727 = vmatprep.mubr.f32.mxu0 0.0
    %v1728 = vand.u32 %v1580, 4294901760
    %1729 = vmatmul.mubr.f32.gmra.mxu0 %v1728
    %v1730 = vpop.f32.mrf.mxu0
    %v1731 = vadd.f32 %v1655, %v1730
    %v1732 = vpop.f32.mrf.mxu0
    %1733 = vdwg.mxu0
    %1734 = vmatprep.subr.mxu0 0.0
    %1735 = vmatpush1.msra.mxu0 0.0
    %1736 = vmatprep.subr.mxu0 0.0
    %1737 = vmatpush1.msra.mxu0 0.0
    %1738 = vmatprep.subr.mxu0 0.0
    %1739 = vmatpush1.msra.mxu0 0.0
    %1740 = vmatprep.subr.mxu0 0.0
    %1741 = vmatpush1.msra.mxu0 0.0
    %1742 = vmatprep.subr.mxu0 0.0
    %1743 = vmatpush1.msra.mxu0 0.0
    %1744 = vmatprep.subr.mxu0 0.0
    %1745 = vmatpush1.msra.mxu0 0.0
    %1746 = vmatprep.subr.mxu0 0.0
    %1747 = vmatpush1.msra.mxu0 0.0
    %1748 = vmatprep.subr.mxu0 0.0
    %1749 = vmatpush1.msra.mxu0 0.0
    %1750 = vmatprep.subr.mxu0 0.0
    %1751 = vmatpush1.msra.mxu0 0.0
    %1752 = vmatprep.subr.mxu0 0.0
    %1753 = vmatpush1.msra.mxu0 0.0
    %1754 = vmatprep.subr.mxu0 0.0
    %1755 = vmatpush1.msra.mxu0 0.0
    %1756 = vmatprep.subr.mxu0 0.0
    %1757 = vmatpush1.msra.mxu0 0.0
    %1758 = vmatprep.subr.mxu0 0.0
    %1759 = vmatpush1.msra.mxu0 0.0
    %1760 = vmatprep.subr.mxu0 0.0
    %1761 = vmatpush1.msra.mxu0 0.0
    %1762 = vmatprep.subr.mxu0 0.0
    %1763 = vmatpush1.msra.mxu0 0.0
    %1764 = vmatprep.subr.mxu0 0.0
    %v1765 = vand.u32 %v1065, 4294901760
    %v1766 = vsub.f32 %v1065, %v1765
    %1767 = vmatpush1.msra.mxu0 %v1766
    %1768 = vmatprep.subr.mxu0 0.0
    %1769 = vmatpush2.msra.mxu0 0.0
    %1770 = vmatprep.subr.mxu0 0.0
    %1771 = vmatpush2.msra.mxu0 0.0
    %1772 = vmatprep.subr.mxu0 0.0
    %1773 = vmatpush2.msra.mxu0 0.0
    %1774 = vmatprep.subr.mxu0 0.0
    %1775 = vmatpush2.msra.mxu0 0.0
    %1776 = vmatprep.subr.mxu0 0.0
    %1777 = vmatpush2.msra.mxu0 0.0
    %1778 = vmatprep.subr.mxu0 0.0
    %1779 = vmatpush2.msra.mxu0 0.0
    %1780 = vmatprep.subr.mxu0 0.0
    %1781 = vmatpush2.msra.mxu0 0.0
    %1782 = vmatprep.subr.mxu0 0.0
    %1783 = vmatpush2.msra.mxu0 0.0
    %1784 = vmatprep.subr.mxu0 0.0
    %1785 = vmatpush2.msra.mxu0 0.0
    %1786 = vmatprep.subr.mxu0 0.0
    %1787 = vmatpush2.msra.mxu0 0.0
    %1788 = vmatprep.subr.mxu0 0.0
    %1789 = vmatpush2.msra.mxu0 0.0
    %1790 = vmatprep.subr.mxu0 0.0
    %1791 = vmatpush2.msra.mxu0 0.0
    %1792 = vmatprep.subr.mxu0 0.0
    %1793 = vmatpush2.msra.mxu0 0.0
    %1794 = vmatprep.subr.mxu0 0.0
    %1795 = vmatpush2.msra.mxu0 0.0
    %1796 = vmatprep.subr.mxu0 0.0
    %1797 = vmatpush2.msra.mxu0 0.0
    %1798 = vmatprep.subr.mxu0 0.0
    %1799 = vmatpush2.msra.mxu0 0.0
    %1800 = vmatprep.mubr.f32.mxu0 0.0
    %v1801 = vand.u32 %v1580, 4294901760
    %v1802 = vsub.f32 %v1580, %v1801
    %1803 = vmatmul.mubr.f32.gmra.mxu0 %v1802
    %v1804 = vpop.f32.mrf.mxu0
    %v1805 = vadd.f32 %v1731, %v1804
    %v1806 = vpop.f32.mrf.mxu0
    %1807 = vdwg.mxu0
    %1808 = vmatprep.subr.mxu0 0.0
    %1809 = vmatpush1.msra.mxu0 0.0
    %1810 = vmatprep.subr.mxu0 0.0
    %1811 = vmatpush1.msra.mxu0 0.0
    %1812 = vmatprep.subr.mxu0 0.0
    %1813 = vmatpush1.msra.mxu0 0.0
    %1814 = vmatprep.subr.mxu0 0.0
    %1815 = vmatpush1.msra.mxu0 0.0
    %1816 = vmatprep.subr.mxu0 0.0
    %1817 = vmatpush1.msra.mxu0 0.0
    %1818 = vmatprep.subr.mxu0 0.0
    %1819 = vmatpush1.msra.mxu0 0.0
    %1820 = vmatprep.subr.mxu0 0.0
    %1821 = vmatpush1.msra.mxu0 0.0
    %1822 = vmatprep.subr.mxu0 0.0
    %1823 = vmatpush1.msra.mxu0 0.0
    %1824 = vmatprep.subr.mxu0 0.0
    %1825 = vmatpush1.msra.mxu0 0.0
    %1826 = vmatprep.subr.mxu0 0.0
    %1827 = vmatpush1.msra.mxu0 0.0
    %1828 = vmatprep.subr.mxu0 0.0
    %1829 = vmatpush1.msra.mxu0 0.0
    %1830 = vmatprep.subr.mxu0 0.0
    %1831 = vmatpush1.msra.mxu0 0.0
    %1832 = vmatprep.subr.mxu0 0.0
    %1833 = vmatpush1.msra.mxu0 0.0
    %1834 = vmatprep.subr.mxu0 0.0
    %1835 = vmatpush1.msra.mxu0 0.0
    %1836 = vmatprep.subr.mxu0 0.0
    %1837 = vmatpush1.msra.mxu0 0.0
    %1838 = vmatprep.subr.mxu0 0.0
    %v1839 = vand.u32 %v1065, 4294901760
    %1840 = vmatpush1.msra.mxu0 %v1839
    %1841 = vmatprep.subr.mxu0 0.0
    %1842 = vmatpush2.msra.mxu0 0.0
    %1843 = vmatprep.subr.mxu0 0.0
    %1844 = vmatpush2.msra.mxu0 0.0
    %1845 = vmatprep.subr.mxu0 0.0
    %1846 = vmatpush2.msra.mxu0 0.0
    %1847 = vmatprep.subr.mxu0 0.0
    %1848 = vmatpush2.msra.mxu0 0.0
    %1849 = vmatprep.subr.mxu0 0.0
    %1850 = vmatpush2.msra.mxu0 0.0
    %1851 = vmatprep.subr.mxu0 0.0
    %1852 = vmatpush2.msra.mxu0 0.0
    %1853 = vmatprep.subr.mxu0 0.0
    %1854 = vmatpush2.msra.mxu0 0.0
    %1855 = vmatprep.subr.mxu0 0.0
    %1856 = vmatpush2.msra.mxu0 0.0
    %1857 = vmatprep.subr.mxu0 0.0
    %1858 = vmatpush2.msra.mxu0 0.0
    %1859 = vmatprep.subr.mxu0 0.0
    %1860 = vmatpush2.msra.mxu0 0.0
    %1861 = vmatprep.subr.mxu0 0.0
    %1862 = vmatpush2.msra.mxu0 0.0
    %1863 = vmatprep.subr.mxu0 0.0
    %1864 = vmatpush2.msra.mxu0 0.0
    %1865 = vmatprep.subr.mxu0 0.0
    %1866 = vmatpush2.msra.mxu0 0.0
    %1867 = vmatprep.subr.mxu0 0.0
    %1868 = vmatpush2.msra.mxu0 0.0
    %1869 = vmatprep.subr.mxu0 0.0
    %1870 = vmatpush2.msra.mxu0 0.0
    %1871 = vmatprep.subr.mxu0 0.0
    %1872 = vmatpush2.msra.mxu0 0.0
    %1873 = vmatprep.mubr.f32.mxu0 0.0
    %v1874 = vand.u32 %v1580, 4294901760
    %v1875 = vsub.f32 %v1580, %v1874
    %v1876 = vand.u32 %v1875, 4294901760
    %1877 = vmatmul.mubr.f32.gmra.mxu0 %v1876
    %v1878 = vpop.f32.mrf.mxu0
    %v1879 = vadd.f32 %v1805, %v1878
    %v1880 = vpop.f32.mrf.mxu0
    %1881 = vdwg.mxu0
    %1882 = vmatprep.subr.mxu0 0.0
    %1883 = vmatpush1.msra.mxu0 0.0
    %1884 = vmatprep.subr.mxu0 0.0
    %1885 = vmatpush1.msra.mxu0 0.0
    %1886 = vmatprep.subr.mxu0 0.0
    %1887 = vmatpush1.msra.mxu0 0.0
    %1888 = vmatprep.subr.mxu0 0.0
    %1889 = vmatpush1.msra.mxu0 0.0
    %1890 = vmatprep.subr.mxu0 0.0
    %1891 = vmatpush1.msra.mxu0 0.0
    %1892 = vmatprep.subr.mxu0 0.0
    %1893 = vmatpush1.msra.mxu0 0.0
    %1894 = vmatprep.subr.mxu0 0.0
    %1895 = vmatpush1.msra.mxu0 0.0
    %1896 = vmatprep.subr.mxu0 0.0
    %1897 = vmatpush1.msra.mxu0 0.0
    %1898 = vmatprep.subr.mxu0 0.0
    %1899 = vmatpush1.msra.mxu0 0.0
    %1900 = vmatprep.subr.mxu0 0.0
    %1901 = vmatpush1.msra.mxu0 0.0
    %1902 = vmatprep.subr.mxu0 0.0
    %1903 = vmatpush1.msra.mxu0 0.0
    %1904 = vmatprep.subr.mxu0 0.0
    %1905 = vmatpush1.msra.mxu0 0.0
    %1906 = vmatprep.subr.mxu0 0.0
    %1907 = vmatpush1.msra.mxu0 0.0
    %1908 = vmatprep.subr.mxu0 0.0
    %1909 = vmatpush1.msra.mxu0 0.0
    %1910 = vmatprep.subr.mxu0 0.0
    %1911 = vmatpush1.msra.mxu0 0.0
    %1912 = vmatprep.subr.mxu0 0.0
    %v1913 = vand.u32 %v1065, 4294901760
    %v1914 = vsub.f32 %v1065, %v1913
    %v1915 = vand.u32 %v1914, 4294901760
    %1916 = vmatpush1.msra.mxu0 %v1915
    %1917 = vmatprep.subr.mxu0 0.0
    %1918 = vmatpush2.msra.mxu0 0.0
    %1919 = vmatprep.subr.mxu0 0.0
    %1920 = vmatpush2.msra.mxu0 0.0
    %1921 = vmatprep.subr.mxu0 0.0
    %1922 = vmatpush2.msra.mxu0 0.0
    %1923 = vmatprep.subr.mxu0 0.0
    %1924 = vmatpush2.msra.mxu0 0.0
    %1925 = vmatprep.subr.mxu0 0.0
    %1926 = vmatpush2.msra.mxu0 0.0
    %1927 = vmatprep.subr.mxu0 0.0
    %1928 = vmatpush2.msra.mxu0 0.0
    %1929 = vmatprep.subr.mxu0 0.0
    %1930 = vmatpush2.msra.mxu0 0.0
    %1931 = vmatprep.subr.mxu0 0.0
    %1932 = vmatpush2.msra.mxu0 0.0
    %1933 = vmatprep.subr.mxu0 0.0
    %1934 = vmatpush2.msra.mxu0 0.0
    %1935 = vmatprep.subr.mxu0 0.0
    %1936 = vmatpush2.msra.mxu0 0.0
    %1937 = vmatprep.subr.mxu0 0.0
    %1938 = vmatpush2.msra.mxu0 0.0
    %1939 = vmatprep.subr.mxu0 0.0
    %1940 = vmatpush2.msra.mxu0 0.0
    %1941 = vmatprep.subr.mxu0 0.0
    %1942 = vmatpush2.msra.mxu0 0.0
    %1943 = vmatprep.subr.mxu0 0.0
    %1944 = vmatpush2.msra.mxu0 0.0
    %1945 = vmatprep.subr.mxu0 0.0
    %1946 = vmatpush2.msra.mxu0 0.0
    %1947 = vmatprep.subr.mxu0 0.0
    %1948 = vmatpush2.msra.mxu0 0.0
    %1949 = vmatprep.mubr.f32.mxu0 0.0
    %v1950 = vand.u32 %v1580, 4294901760
    %1951 = vmatmul.mubr.f32.gmra.mxu0 %v1950
    %v1952 = vpop.f32.mrf.mxu0
    %v1953 = vadd.f32 %v1879, %v1952
    %v1954 = vpop.f32.mrf.mxu0
    %1955 = vdwg.mxu0
    %1956 = vmatprep.subr.mxu0 0.0
    %1957 = vmatpush1.msra.mxu0 0.0
    %1958 = vmatprep.subr.mxu0 0.0
    %1959 = vmatpush1.msra.mxu0 0.0
    %1960 = vmatprep.subr.mxu0 0.0
    %1961 = vmatpush1.msra.mxu0 0.0
    %1962 = vmatprep.subr.mxu0 0.0
    %1963 = vmatpush1.msra.mxu0 0.0
    %1964 = vmatprep.subr.mxu0 0.0
    %1965 = vmatpush1.msra.mxu0 0.0
    %1966 = vmatprep.subr.mxu0 0.0
    %1967 = vmatpush1.msra.mxu0 0.0
    %1968 = vmatprep.subr.mxu0 0.0
    %1969 = vmatpush1.msra.mxu0 0.0
    %1970 = vmatprep.subr.mxu0 0.0
    %1971 = vmatpush1.msra.mxu0 0.0
    %1972 = vmatprep.subr.mxu0 0.0
    %1973 = vmatpush1.msra.mxu0 0.0
    %1974 = vmatprep.subr.mxu0 0.0
    %1975 = vmatpush1.msra.mxu0 0.0
    %1976 = vmatprep.subr.mxu0 0.0
    %1977 = vmatpush1.msra.mxu0 0.0
    %1978 = vmatprep.subr.mxu0 0.0
    %1979 = vmatpush1.msra.mxu0 0.0
    %1980 = vmatprep.subr.mxu0 0.0
    %1981 = vmatpush1.msra.mxu0 0.0
    %1982 = vmatprep.subr.mxu0 0.0
    %1983 = vmatpush1.msra.mxu0 0.0
    %1984 = vmatprep.subr.mxu0 0.0
    %1985 = vmatpush1.msra.mxu0 0.0
    %1986 = vmatprep.subr.mxu0 0.0
    %v1987 = vand.u32 %v1065, 4294901760
    %1988 = vmatpush1.msra.mxu0 %v1987
    %1989 = vmatprep.subr.mxu0 0.0
    %1990 = vmatpush2.msra.mxu0 0.0
    %1991 = vmatprep.subr.mxu0 0.0
    %1992 = vmatpush2.msra.mxu0 0.0
    %1993 = vmatprep.subr.mxu0 0.0
    %1994 = vmatpush2.msra.mxu0 0.0
    %1995 = vmatprep.subr.mxu0 0.0
    %1996 = vmatpush2.msra.mxu0 0.0
    %1997 = vmatprep.subr.mxu0 0.0
    %1998 = vmatpush2.msra.mxu0 0.0
    %1999 = vmatprep.subr.mxu0 0.0
    %2000 = vmatpush2.msra.mxu0 0.0
    %2001 = vmatprep.subr.mxu0 0.0
    %2002 = vmatpush2.msra.mxu0 0.0
    %2003 = vmatprep.subr.mxu0 0.0
    %2004 = vmatpush2.msra.mxu0 0.0
    %2005 = vmatprep.subr.mxu0 0.0
    %2006 = vmatpush2.msra.mxu0 0.0
    %2007 = vmatprep.subr.mxu0 0.0
    %2008 = vmatpush2.msra.mxu0 0.0
    %2009 = vmatprep.subr.mxu0 0.0
    %2010 = vmatpush2.msra.mxu0 0.0
    %2011 = vmatprep.subr.mxu0 0.0
    %2012 = vmatpush2.msra.mxu0 0.0
    %2013 = vmatprep.subr.mxu0 0.0
    %2014 = vmatpush2.msra.mxu0 0.0
    %2015 = vmatprep.subr.mxu0 0.0
    %2016 = vmatpush2.msra.mxu0 0.0
    %2017 = vmatprep.subr.mxu0 0.0
    %2018 = vmatpush2.msra.mxu0 0.0
    %2019 = vmatprep.subr.mxu0 0.0
    %2020 = vmatpush2.msra.mxu0 0.0
    %2021 = vmatprep.mubr.f32.mxu0 0.0
    %v2022 = vand.u32 %v1580, 4294901760
    %2023 = vmatmul.mubr.f32.gmra.mxu0 %v2022
    %v2024 = vpop.f32.mrf.mxu0
    %v2025 = vadd.f32 %v1953, %v2024
    %v2026 = vpop.f32.mrf.mxu0
    %2027 = vdwg.mxu0
    %v2028 = vmax.f32 %v578, 0.0
    %v2029 = vmax.f32 %v1059, 0.0
    %v2030 = vmax.f32 %v1544, 0.0
    %v2031 = vmax.f32 %v2025, 0.0
    %v2032 = vadd.f32 %v2028, %v2030
    %v2033 = vadd.f32 %v2029, %v2031
    %v2034 = vmul.f32 %v2028, %v2030
    %v2035 = vmul.f32 %v2029, %v2031
    %v2036 = vrsqrt.pop %v2034
    %v2037 = vmul.f32 %v2034, %v2036
    %vm2038 = vcmp.eq.f32.partialorder %v2034, inf
    %v2039 = vsel %vm2038, %v2034, %v2037
    %vm2040 = vcmp.eq.f32.partialorder %v2034, 0.0
    %v2041 = vand.u32 %v2034, 2147483648
    %v2042 = vsel %vm2040, %v2041, %v2039
    %v2043 = vrsqrt.pop %v2035
    %v2044 = vmul.f32 %v2035, %v2043
    %vm2045 = vcmp.eq.f32.partialorder %v2035, inf
    %v2046 = vsel %vm2045, %v2035, %v2044
    %vm2047 = vcmp.eq.f32.partialorder %v2035, 0.0
    %v2048 = vand.u32 %v2035, 2147483648
    %v2049 = vsel %vm2047, %v2048, %v2046
    %v2050 = vmul.f32 %v2042, 2.0
    %v2051 = vmul.f32 %v2049, 2.0
    %v2052 = vsub.f32 %v2032, %v2050
    %v2053 = vsub.f32 %v2033, %v2051
    %v2054 = vmax.f32 %v2052, 0.0
    %v2055 = vmax.f32 %v2053, 0.0
    %v2056 = vlaneseq
    %v2057 = vshrl.u32 %v2056, 7
    %v2058 = vlaneseq
    %v2059 = vand.u32 %v2058, 127
    %vm2060 = vcmp.ne.s32.totalorder %v2057, %v2059
    %p2061 = scmp.ne.s32.totalorder %s93, %s94
    %s2062 = scalar_select %p2061, 1, 0
    %v2063 = vstv %s2062
    %vm2064 = vcmp.eq.s32.totalorder %v2063, 1
    %vm2065 = vmor %vm2060, %vm2064
    %v2066 = vsel %vm2065, %v2054, 0.0
    %v2067 = vsel %vm2065, %v2055, 0.0
    %v2068 = vsel %vm131, %v2066, 0.0
    %v2069 = vrot.slane %v2068, 4
    %v2070 = vadd.f32 %v2068, %v2069
    %v2071 = vrot.slane %v2070, 2
    %v2072 = vadd.f32 %v2070, %v2071
    %v2073 = vrot.slane %v2072, 1
    %v2074 = vadd.f32 %v2072, %v2073
    %v2075 = vsel %vm131, %v2067, 0.0
    %v2076 = vrot.slane %v2075, 4
    %v2077 = vadd.f32 %v2075, %v2076
    %v2078 = vrot.slane %v2077, 2
    %v2079 = vadd.f32 %v2077, %v2078
    %v2080 = vrot.slane %v2079, 1
    %v2081 = vadd.f32 %v2079, %v2080
    %p2082 = scmp.gt.s32.totalorder %s94, %s93
    %s2083 = scalar_select %p2082, 2.0, 1.0
    %v2084 = vstv %s2083
    %v2085 = vmul.f32 %v2074, %v2084
    %v2086 = vmul.f32 %v2081, %v2084
    %vm2089 = vcmask 1041409
    %v2090 = vsel %vm2089, %v2086, %v2085
    %vm2092 = vcmask 58368
    %2093 = vst.msk [vmem:[#allocation13] sm:$0x3] %vm2092, %v2090
    // Predicated region
    $region34: #{tpu_custom_call.1} parent=1 // pred_check
      _
    $region35: #{tpu_custom_call.1} parent=1 // pred_check_branch
      %2095 = sbr.rel (0) target = $region37
    $region36: #{tpu_custom_call.1} parent=1 // pred_region
      %s2097 = ssub.s32 32, 32
      %2098 = vsyncadd [#allocation7], %s2097
      %s2100 = sshll.u32 [#allocation13], 4
      %s2101 = int_to_ptr.vmem [resolvable:$true] %s2100
      %2103 = dma.vmem_to_hbm [thread:$0]  %s2101, 32, %s6, [#allocation7]
    $region37: #{tpu_custom_call.1} parent=1 // pred_fallthru
      _
    // Predicated region
    $region38: #{tpu_custom_call.1} parent=1 // pred_check
      _
    $region39: #{tpu_custom_call.1} parent=1 // pred_check_branch
      %2105 = sbr.rel (0) target = $region41
    $region40: #{tpu_custom_call.1} parent=1 // pred_region
      %2106 = dma.done [#allocation7], 32
    $region41: #{tpu_custom_call.1} parent=1 // pred_fallthru
      _
    %2107 = vsyncpa [#allocation6], 1
    %2108 = vsyncpa [#allocation9], 1
    %2109 = vsyncpa [#allocation12], 1
    %2110 = vsyncpa [#allocation7], 1

</llo_original>
